<compile_context>
chip_gen: v7x
topology: tpu7x:2x2x1
jax: 0.10.0
libtpu: 0.0.40
codegen_flags: <defaults>
</compile_context>

<pallas_src>
import functools
import jax
import jax.numpy as jnp
from jax.experimental import pallas as pl
from jax.experimental.pallas import tpu as pltpu

HIDDEN = 512


def _round_up(x, m):
    return ((x + m - 1) // m) * m


def _device_kind():
    try:
        return jax.devices()[0].device_kind.lower()
    except Exception:
        return ""


def _mlp_kernel(x_ref,
                w1_ref, b1_ref,
                aw2_ref, ab2_ref, cw2_ref, cb2_ref,
                aw3_ref, cw3_ref, b3_ref,
                out_ref,
                *, act_dtype):
    """Fused actor/critic 3-layer MLP over a (TM, F) slab of rows.

    Writes a lane-dense (TM, OUT_PAD) slab: actor logits in columns
    [0, output_size), critic value in column `output_size` (encoded in the
    packed cw3 / b3 weights).
    """
    x = x_ref[...]                                               # (TM, F) bf16

    # ---- fused layer 1 (actor | critic share the same LHS x) ----
    pre1 = (jnp.dot(x, w1_ref[...], preferred_element_type=jnp.float32)
            + b1_ref[...])                                       # (TM, 2H) f32
    hg = jnp.tanh(pre1.astype(act_dtype))                        # EUP (bf16 on v6e/v7x)
    h0 = hg[:, :HIDDEN].astype(jnp.bfloat16)
    g0 = hg[:, HIDDEN:].astype(jnp.bfloat16)

    # ---- layer 2 ----
    h1 = jnp.tanh((jnp.dot(h0, aw2_ref[...], preferred_element_type=jnp.float32)
                   + ab2_ref[...]).astype(act_dtype)).astype(jnp.bfloat16)
    g1 = jnp.tanh((jnp.dot(g0, cw2_ref[...], preferred_element_type=jnp.float32)
                   + cb2_ref[...]).astype(act_dtype)).astype(jnp.bfloat16)

    # ---- layer 3: critic head fused into the actor-head MXU matmul ----
    out = (jnp.dot(h1, aw3_ref[...], preferred_element_type=jnp.float32)
           + jnp.dot(g1, cw3_ref[...], preferred_element_type=jnp.float32)
           + b3_ref[...])                                        # (TM, OUT_PAD) f32
    out_ref[...] = out.astype(out_ref.dtype)


def _orthogonal(key, out_features, in_features, gain):
    """PyTorch-style orthogonal init on an (out, in) weight, returned as (in, out)."""
    w = jax.nn.initializers.orthogonal(scale=gain)(
        key, (out_features, in_features), jnp.float32)
    return jnp.transpose(w)  # -> (in, out)


def init_params(key, input_size, output_size):
    tanh_gain = 5.0 / 3.0  # nn.init.calculate_gain('tanh')
    ks = jax.random.split(key, 6)
    params = {
        # actor
        "aw1": _orthogonal(ks[0], HIDDEN, input_size, tanh_gain),
        "ab1": jnp.zeros((1, HIDDEN), jnp.float32),
        "aw2": _orthogonal(ks[1], HIDDEN, HIDDEN, tanh_gain),
        "ab2": jnp.zeros((1, HIDDEN), jnp.float32),
        "aw3": _orthogonal(ks[2], output_size, HIDDEN, 0.01),
        "ab3": jnp.zeros((1, output_size), jnp.float32),
        # critic
        "cw1": _orthogonal(ks[3], HIDDEN, input_size, tanh_gain),
        "cb1": jnp.zeros((1, HIDDEN), jnp.float32),
        "cw2": _orthogonal(ks[4], HIDDEN, HIDDEN, tanh_gain),
        "cb2": jnp.zeros((1, HIDDEN), jnp.float32),
        "cw3": _orthogonal(ks[5], 1, HIDDEN, 1.0),
        "cb3": jnp.zeros((1, 1), jnp.float32),
    }
    return params


def _pack_params(params, output_size, out_pad):
    """Kernel-layout parameters: fused layer 1, bf16 matmul weights, lane-padded
    actor head, critic head packed into column `output_size` of a zero matrix."""
    w1 = jnp.concatenate([params["aw1"], params["cw1"]], axis=1).astype(jnp.bfloat16)
    b1 = jnp.concatenate([params["ab1"], params["cb1"]], axis=1)            # f32

    aw2 = params["aw2"].astype(jnp.bfloat16)
    ab2 = params["ab2"]
    cw2 = params["cw2"].astype(jnp.bfloat16)
    cb2 = params["cb2"]

    # actor head: (HIDDEN, OUT_PAD), lane-padded with zeros
    aw3 = jnp.pad(params["aw3"],
                  ((0, 0), (0, out_pad - output_size))).astype(jnp.bfloat16)
    # critic head: column `output_size` of a zero (HIDDEN, OUT_PAD) matrix
    cw3 = (jnp.zeros((HIDDEN, out_pad), jnp.float32)
           .at[:, output_size:output_size + 1].set(params["cw3"])
           .astype(jnp.bfloat16))
    # combined bias: ab3 in [0, output_size), cb3 in column `output_size`
    b3 = jnp.zeros((1, out_pad), jnp.float32)
    b3 = b3.at[:, :output_size].set(params["ab3"])
    b3 = b3.at[:, output_size:output_size + 1].set(params["cb3"])
    return [w1, b1, aw2, ab2, cw2, cb2, aw3, cw3, b3]


def time_distributed_mlp(inputs, masks, states, params, output_size):
    """Forward pass mirroring TimeDistributedMultiLayerPerceptron.forward.

    inputs: (T, B, input_size) float32
    returns (actor_logits (T,B,output_size), values (T,B,1), states)
    """
    del masks  # unused by the reference forward
    T, B, F = inputs.shape
    M = T * B

    kind = _device_kind()
    is_v5 = "v5" in kind
    is_v7 = "v7" in kind
    # v5e VPU/EUP have no bf16 -> keep tanh in f32 there; bf16 on v6e/v7x.
    act_dtype = jnp.float32 if is_v5 else jnp.bfloat16
    # Row-tile cap: big on v5e/v6e (128 MiB VMEM), conservative on v7x (64 MiB).
    tm_cap = 512 if is_v7 else 1024
    vmem_limit = (32 << 20) if is_v7 else (64 << 20)

    # Row tile: multiple of 16 (bf16 sublane pack); cap keeps VMEM bounded.
    TM = tm_cap if M >= tm_cap else _round_up(M, 16)
    M_pad = _round_up(M, TM)
    n_blocks = M_pad // TM

    # Lane-dense output slab width: actor columns + 1 critic column, padded to 128.
    OUT_PAD = _round_up(output_size + 1, 128)

    x2d = inputs.reshape(M, F)
    x2d = jnp.pad(x2d, ((0, M_pad - M), (0, 0))).astype(jnp.bfloat16)

    weight_args = _pack_params(params, output_size, OUT_PAD)
    args = [x2d] + weight_args

    # x is streamed in (TM, F) row tiles; every weight/bias stays resident
    # (constant block index across the grid).
    resident = lambda w: pl.BlockSpec(w.shape, lambda i: (0, 0))
    in_specs = ([pl.BlockSpec((TM, F), lambda i: (i, 0))]
                + [resident(w) for w in weight_args])
    out_spec = pl.BlockSpec((TM, OUT_PAD), lambda i: (i, 0))

    weight_bytes = sum(int(w.size) * w.dtype.itemsize for w in weight_args)
    cost = pl.CostEstimate(
        flops=2 * M_pad * (F * 2 * HIDDEN + 2 * HIDDEN * HIDDEN + 2 * HIDDEN * OUT_PAD),
        transcendentals=M_pad * 4 * HIDDEN,
        bytes_accessed=M_pad * F * 2 + M_pad * OUT_PAD * 4 + weight_bytes,
    )

    kernel = functools.partial(_mlp_kernel, act_dtype=act_dtype)

    out_slab = pl.pallas_call(
        kernel,
        out_shape=jax.ShapeDtypeStruct((M_pad, OUT_PAD), jnp.float32),
        grid_spec=pltpu.PrefetchScalarGridSpec(
            num_scalar_prefetch=0,
            grid=(n_blocks,),
            in_specs=in_specs,
            out_specs=out_spec,
        ),
        compiler_params=pltpu.CompilerParams(
            dimension_semantics=("parallel",),
            vmem_limit_bytes=vmem_limit,
        ),
        cost_estimate=cost,
    )(*args)

    actor2d = out_slab[:M, :output_size]
    critic2d = out_slab[:M, output_size:output_size + 1]

    return (actor2d.reshape(T, B, output_size),
            critic2d.reshape(T, B, 1),
            states)


def _reference(inputs, params):
    """Pure-JAX f32 reference for correctness checking."""
    x = inputs
    h = jnp.tanh(x @ params["aw1"] + params["ab1"])
    h = jnp.tanh(h @ params["aw2"] + params["ab2"])
    actor = h @ params["aw3"] + params["ab3"]
    g = jnp.tanh(x @ params["cw1"] + params["cb1"])
    g = jnp.tanh(g @ params["cw2"] + params["cb2"])
    critic = g @ params["cw3"] + params["cb3"]
    return actor, critic


if __name__ == "__main__":
    key = jax.random.PRNGKey(0)
    k_inp, k_par, k_st = jax.random.split(key, 3)

    T, B = 8, 2
    input_size, output_size = 32, 8

    inputs = jax.random.normal(k_inp, (T, B, input_size), jnp.float32)
    masks = jnp.ones((T, B, 1), jnp.float32)   # unused by forward, kept for API parity
    states = jax.random.normal(k_st, (B, 16), jnp.float32)

    params = init_params(k_par, input_size, output_size)

    actor_out, critic_out, states_out = time_distributed_mlp(
        inputs, masks, states, params, output_size)
    jax.block_until_ready((actor_out, critic_out, states_out))

    # Sanity check against pure-JAX f32 reference. Matmuls run in bf16 with f32
    # accumulation (and tanh in bf16 on v6e/v7x), so tolerance is loosened.
    ref_actor, ref_critic = _reference(inputs, params)
    assert actor_out.shape == (T, B, output_size)
    assert critic_out.shape == (T, B, 1)
    assert jnp.allclose(actor_out, ref_actor, atol=5e-2, rtol=5e-2)
    assert jnp.allclose(critic_out, ref_critic, atol=5e-2, rtol=5e-2)
    assert states_out is states

    print("KERNEL_OK")
</pallas_src>

<mosaic_0001>
module attributes {stable_mosaic.version = 11 : i64} {
  func.func @_mlp_kernel(%arg0: i32, %arg1: memref<16x32xbf16, #tpu.memory_space<vmem>>, %arg2: memref<32x1024xbf16, #tpu.memory_space<vmem>>, %arg3: memref<1x1024xf32, #tpu.memory_space<vmem>>, %arg4: memref<512x512xbf16, #tpu.memory_space<vmem>>, %arg5: memref<1x512xf32, #tpu.memory_space<vmem>>, %arg6: memref<512x512xbf16, #tpu.memory_space<vmem>>, %arg7: memref<1x512xf32, #tpu.memory_space<vmem>>, %arg8: memref<512x128xbf16, #tpu.memory_space<vmem>>, %arg9: memref<512x128xbf16, #tpu.memory_space<vmem>>, %arg10: memref<1x128xf32, #tpu.memory_space<vmem>>, %arg11: memref<16x128xf32, #tpu.memory_space<vmem>>) attributes {dimension_semantics = [#tpu.dimension_semantics<parallel>], iteration_bounds = array<i64: 1>, scalar_prefetch = 0 : i64, scratch_operands = 0 : i64, tpu.core_type = #tpu.core_type<tc>, window_params = [{transform_indices = @transform_0, window_bounds = array<i64: 16, 32>}, {pipeline_mode = #tpu.pipeline_mode<synchronous>, transform_indices = @transform_1, window_bounds = array<i64: 32, 1024>}, {pipeline_mode = #tpu.pipeline_mode<synchronous>, transform_indices = @transform_2, window_bounds = array<i64: 1, 1024>}, {pipeline_mode = #tpu.pipeline_mode<synchronous>, transform_indices = @transform_3, window_bounds = array<i64: 512, 512>}, {pipeline_mode = #tpu.pipeline_mode<synchronous>, transform_indices = @transform_4, window_bounds = array<i64: 1, 512>}, {pipeline_mode = #tpu.pipeline_mode<synchronous>, transform_indices = @transform_5, window_bounds = array<i64: 512, 512>}, {pipeline_mode = #tpu.pipeline_mode<synchronous>, transform_indices = @transform_6, window_bounds = array<i64: 1, 512>}, {pipeline_mode = #tpu.pipeline_mode<synchronous>, transform_indices = @transform_7, window_bounds = array<i64: 512, 128>}, {pipeline_mode = #tpu.pipeline_mode<synchronous>, transform_indices = @transform_8, window_bounds = array<i64: 512, 128>}, {pipeline_mode = #tpu.pipeline_mode<synchronous>, transform_indices = @transform_9, window_bounds = array<i64: 1, 128>}, {transform_indices = @transform_10, window_bounds = array<i64: 16, 128>}]} {
    %c0 = arith.constant 0 : index
    %c0_0 = arith.constant 0 : index
    %0 = vector.load %arg1[%c0, %c0_0] : memref<16x32xbf16, #tpu.memory_space<vmem>>, vector<16x32xbf16>
    %c0_1 = arith.constant 0 : index
    %c0_2 = arith.constant 0 : index
    %1 = vector.load %arg2[%c0_1, %c0_2] : memref<32x1024xbf16, #tpu.memory_space<vmem>>, vector<32x1024xbf16>
    %cst = arith.constant dense<0.000000e+00> : vector<16x1024xf32>
    %2 = tpu.matmul %0, %1, %cst {dimension_numbers = #tpu.dot_dimension_numbers<[1], [0], [0], [1], [0, 0, 1, 1], [], []>} : vector<16x32xbf16>, vector<32x1024xbf16>, vector<16x1024xf32> -> vector<16x1024xf32>
    %c0_3 = arith.constant 0 : index
    %c0_4 = arith.constant 0 : index
    %3 = vector.load %arg3[%c0_3, %c0_4] : memref<1x1024xf32, #tpu.memory_space<vmem>>, vector<1x1024xf32>
    %4 = vector.broadcast %3 : vector<1x1024xf32> to vector<16x1024xf32>
    %5 = arith.addf %2, %4 : vector<16x1024xf32>
    %6 = arith.truncf %5 : vector<16x1024xf32> to vector<16x1024xbf16>
    %7 = math.tanh %6 : vector<16x1024xbf16>
    %8 = vector.extract_strided_slice %7 {offsets = [0, 0], sizes = [16, 512], strides = [1, 1]} : vector<16x1024xbf16> to vector<16x512xbf16>
    %9 = vector.extract_strided_slice %7 {offsets = [0, 512], sizes = [16, 512], strides = [1, 1]} : vector<16x1024xbf16> to vector<16x512xbf16>
    %c0_5 = arith.constant 0 : index
    %c0_6 = arith.constant 0 : index
    %10 = vector.load %arg4[%c0_5, %c0_6] : memref<512x512xbf16, #tpu.memory_space<vmem>>, vector<512x512xbf16>
    %cst_7 = arith.constant dense<0.000000e+00> : vector<16x512xf32>
    %11 = tpu.matmul %8, %10, %cst_7 {dimension_numbers = #tpu.dot_dimension_numbers<[1], [0], [0], [1], [0, 0, 1, 1], [], []>} : vector<16x512xbf16>, vector<512x512xbf16>, vector<16x512xf32> -> vector<16x512xf32>
    %c0_8 = arith.constant 0 : index
    %c0_9 = arith.constant 0 : index
    %12 = vector.load %arg5[%c0_8, %c0_9] : memref<1x512xf32, #tpu.memory_space<vmem>>, vector<1x512xf32>
    %13 = vector.broadcast %12 : vector<1x512xf32> to vector<16x512xf32>
    %14 = arith.addf %11, %13 : vector<16x512xf32>
    %15 = arith.truncf %14 : vector<16x512xf32> to vector<16x512xbf16>
    %16 = math.tanh %15 : vector<16x512xbf16>
    %c0_10 = arith.constant 0 : index
    %c0_11 = arith.constant 0 : index
    %17 = vector.load %arg6[%c0_10, %c0_11] : memref<512x512xbf16, #tpu.memory_space<vmem>>, vector<512x512xbf16>
    %cst_12 = arith.constant dense<0.000000e+00> : vector<16x512xf32>
    %18 = tpu.matmul %9, %17, %cst_12 {dimension_numbers = #tpu.dot_dimension_numbers<[1], [0], [0], [1], [0, 0, 1, 1], [], []>} : vector<16x512xbf16>, vector<512x512xbf16>, vector<16x512xf32> -> vector<16x512xf32>
    %c0_13 = arith.constant 0 : index
    %c0_14 = arith.constant 0 : index
    %19 = vector.load %arg7[%c0_13, %c0_14] : memref<1x512xf32, #tpu.memory_space<vmem>>, vector<1x512xf32>
    %20 = vector.broadcast %19 : vector<1x512xf32> to vector<16x512xf32>
    %21 = arith.addf %18, %20 : vector<16x512xf32>
    %22 = arith.truncf %21 : vector<16x512xf32> to vector<16x512xbf16>
    %23 = math.tanh %22 : vector<16x512xbf16>
    %c0_15 = arith.constant 0 : index
    %c0_16 = arith.constant 0 : index
    %24 = vector.load %arg8[%c0_15, %c0_16] : memref<512x128xbf16, #tpu.memory_space<vmem>>, vector<512x128xbf16>
    %cst_17 = arith.constant dense<0.000000e+00> : vector<16x128xf32>
    %25 = tpu.matmul %16, %24, %cst_17 {dimension_numbers = #tpu.dot_dimension_numbers<[1], [0], [0], [1], [0, 0, 1, 1], [], []>} : vector<16x512xbf16>, vector<512x128xbf16>, vector<16x128xf32> -> vector<16x128xf32>
    %c0_18 = arith.constant 0 : index
    %c0_19 = arith.constant 0 : index
    %26 = vector.load %arg9[%c0_18, %c0_19] : memref<512x128xbf16, #tpu.memory_space<vmem>>, vector<512x128xbf16>
    %cst_20 = arith.constant dense<0.000000e+00> : vector<16x128xf32>
    %27 = tpu.matmul %23, %26, %cst_20 {dimension_numbers = #tpu.dot_dimension_numbers<[1], [0], [0], [1], [0, 0, 1, 1], [], []>} : vector<16x512xbf16>, vector<512x128xbf16>, vector<16x128xf32> -> vector<16x128xf32>
    %28 = arith.addf %25, %27 : vector<16x128xf32>
    %c0_21 = arith.constant 0 : index
    %c0_22 = arith.constant 0 : index
    %29 = vector.load %arg10[%c0_21, %c0_22] : memref<1x128xf32, #tpu.memory_space<vmem>>, vector<1x128xf32>
    %30 = vector.broadcast %29 : vector<1x128xf32> to vector<16x128xf32>
    %31 = arith.addf %28, %30 : vector<16x128xf32>
    %c0_23 = arith.constant 0 : index
    %c0_24 = arith.constant 0 : index
    %32 = vector.load %arg11[%c0_23, %c0_24] : memref<16x128xf32, #tpu.memory_space<vmem>>, vector<16x128xf32>
    tpu.vector_store %arg11[%c0_23, %c0_24], %31 {strides = array<i32>} : memref<16x128xf32, #tpu.memory_space<vmem>>, vector<16x128xf32>,
    return
  }
  func.func @transform_0(%arg0: i32) -> (i32, i32) {
    %c0_i32 = arith.constant 0 : i32
    %c0_i32_0 = arith.constant 0 : i32
    return %arg0, %c0_i32 : i32, i32
  }
  func.func @transform_1(%arg0: i32) -> (i32, i32) {
    %c0_i32 = arith.constant 0 : i32
    %c0_i32_0 = arith.constant 0 : i32
    %c0_i32_1 = arith.constant 0 : i32
    return %c0_i32, %c0_i32_0 : i32, i32
  }
  func.func @transform_2(%arg0: i32) -> (i32, i32) {
    %c0_i32 = arith.constant 0 : i32
    %c0_i32_0 = arith.constant 0 : i32
    %c0_i32_1 = arith.constant 0 : i32
    return %c0_i32, %c0_i32_0 : i32, i32
  }
  func.func @transform_3(%arg0: i32) -> (i32, i32) {
    %c0_i32 = arith.constant 0 : i32
    %c0_i32_0 = arith.constant 0 : i32
    %c0_i32_1 = arith.constant 0 : i32
    return %c0_i32, %c0_i32_0 : i32, i32
  }
  func.func @transform_4(%arg0: i32) -> (i32, i32) {
    %c0_i32 = arith.constant 0 : i32
    %c0_i32_0 = arith.constant 0 : i32
    %c0_i32_1 = arith.constant 0 : i32
    return %c0_i32, %c0_i32_0 : i32, i32
  }
  func.func @transform_5(%arg0: i32) -> (i32, i32) {
    %c0_i32 = arith.constant 0 : i32
    %c0_i32_0 = arith.constant 0 : i32
    %c0_i32_1 = arith.constant 0 : i32
    return %c0_i32, %c0_i32_0 : i32, i32
  }
  func.func @transform_6(%arg0: i32) -> (i32, i32) {
    %c0_i32 = arith.constant 0 : i32
    %c0_i32_0 = arith.constant 0 : i32
    %c0_i32_1 = arith.constant 0 : i32
    return %c0_i32, %c0_i32_0 : i32, i32
  }
  func.func @transform_7(%arg0: i32) -> (i32, i32) {
    %c0_i32 = arith.constant 0 : i32
    %c0_i32_0 = arith.constant 0 : i32
    %c0_i32_1 = arith.constant 0 : i32
    return %c0_i32, %c0_i32_0 : i32, i32
  }
  func.func @transform_8(%arg0: i32) -> (i32, i32) {
    %c0_i32 = arith.constant 0 : i32
    %c0_i32_0 = arith.constant 0 : i32
    %c0_i32_1 = arith.constant 0 : i32
    return %c0_i32, %c0_i32_0 : i32, i32
  }
  func.func @transform_9(%arg0: i32) -> (i32, i32) {
    %c0_i32 = arith.constant 0 : i32
    %c0_i32_0 = arith.constant 0 : i32
    %c0_i32_1 = arith.constant 0 : i32
    return %c0_i32, %c0_i32_0 : i32, i32
  }
  func.func @transform_10(%arg0: i32) -> (i32, i32) {
    %c0_i32 = arith.constant 0 : i32
    %c0_i32_0 = arith.constant 0 : i32
    return %arg0, %c0_i32 : i32, i32
  }
}

</mosaic_0001>

<llo_original>
// kernel: tpu_custom_call.1
$region0: #{tpu_custom_call.1}
  #allocation0 [shape = 'u32[]', space=smem, size = 0x4, offset = 0x4, fixed_abs, tag = 'smem constant byte address 0x4 - core index']
  #allocation1 [shape = 'u32[144,128]{1,0:T(1,128)}', space=vmem, size = 0x12000, scoped, tag = 'internal scratch']
  %s0 = inlined_call_operand.hbm [shape: bf16[16,32], index: 0, kind: input, shape index: {}]
  %s1 = inlined_call_operand.hbm [shape: bf16[32,1024], index: 1, kind: input, shape index: {}]
  %s2 = inlined_call_operand.hbm [shape: f32[1,1024], index: 2, kind: input, shape index: {}]
  %s3 = inlined_call_operand.hbm [shape: bf16[512,512], index: 3, kind: input, shape index: {}]
  %s4 = inlined_call_operand.hbm [shape: f32[1,512], index: 4, kind: input, shape index: {}]
  %s5 = inlined_call_operand.hbm [shape: bf16[512,512], index: 5, kind: input, shape index: {}]
  %s6 = inlined_call_operand.hbm [shape: f32[1,512], index: 6, kind: input, shape index: {}]
  %s7 = inlined_call_operand.hbm [shape: bf16[512,128], index: 7, kind: input, shape index: {}]
  %s8 = inlined_call_operand.hbm [shape: bf16[512,128], index: 8, kind: input, shape index: {}]
  %s9 = inlined_call_operand.hbm [shape: f32[1,128], index: 9, kind: input, shape index: {}]
  %s10 = inlined_call_operand.hbm [shape: f32[16,128], index: 10, kind: output, shape index: {}]
  %s11 = sld [smem:[#allocation0]]
  $region90: #{tpu_custom_call.1} parent=0
    _
  %s13 = ssub.s32 1, %s11
  %s14 = scalar_select 0, %s13, %s11
  $region1: #{tpu_custom_call.1} parent=0
    #allocation2 [shape = 'u8[4096]{0}', space=vmem, size = 0x1000, scoped, tag = 'input window, operand 0, single buffered']
    #allocation3 [shape = 's32[1]{0}', space=sflag, size = 0x4, scoped, tag = 'scoped memory for tpu_custom_call.1']
    #allocation4 [shape = 's32[1]{0}', space=sflag, size = 0x4, scoped, tag = 'scoped memory for tpu_custom_call.1']
    #allocation5 [shape = 'u8[65536]{0}', space=vmem, size = 0x10000, scoped, tag = 'input window, operand 1, single buffered']
    #allocation6 [shape = 's32[1]{0}', space=sflag, size = 0x4, scoped, tag = 'scoped memory for tpu_custom_call.1']
    #allocation7 [shape = 'u8[4096]{0}', space=vmem, size = 0x1000, scoped, tag = 'input window, operand 2, single buffered']
    #allocation8 [shape = 'u8[524288]{0}', space=vmem, size = 0x80000, scoped, tag = 'input window, operand 3, single buffered']
    #allocation9 [shape = 's32[1]{0}', space=sflag, size = 0x4, scoped, tag = 'scoped memory for tpu_custom_call.1']
    #allocation10 [shape = 'u8[2048]{0}', space=vmem, size = 0x800, scoped, tag = 'input window, operand 4, single buffered']
    #allocation11 [shape = 'u8[524288]{0}', space=vmem, size = 0x80000, scoped, tag = 'input window, operand 5, single buffered']
    #allocation12 [shape = 's32[1]{0}', space=sflag, size = 0x4, scoped, tag = 'scoped memory for tpu_custom_call.1']
    #allocation13 [shape = 'u8[2048]{0}', space=vmem, size = 0x800, scoped, tag = 'input window, operand 6, single buffered']
    #allocation14 [shape = 'u8[131072]{0}', space=vmem, size = 0x20000, scoped, tag = 'input window, operand 7, single buffered']
    #allocation15 [shape = 's32[1]{0}', space=sflag, size = 0x4, scoped, tag = 'scoped memory for tpu_custom_call.1']
    #allocation16 [shape = 'u8[131072]{0}', space=vmem, size = 0x20000, scoped, tag = 'input window, operand 8, single buffered']
    #allocation17 [shape = 'u8[512]{0}', space=vmem, size = 0x400, scoped, tag = 'input window, operand 9, single buffered']
    #allocation18 [shape = 's32[1]{0}', space=sflag, size = 0x4, scoped, tag = 'scoped memory for tpu_custom_call.1']
    #allocation19 [shape = 'u8[8192]{0}', space=vmem, size = 0x2000, scoped, tag = 'output window, operand 0, single buffered']
    %15 = vsyncpa [#allocation3], 0
    %16 = vsyncpa [#allocation6], 0
    %17 = vsyncpa [#allocation9], 0
    %18 = vsyncpa [#allocation12], 0
    %19 = vsyncpa [#allocation15], 0
    %20 = vsyncpa [#allocation18], 0
    %21 = vsyncpa [#allocation4], 0
    // Predicated region
    $region2: #{tpu_custom_call.1} parent=1 // pred_check
      _
    $region3: #{tpu_custom_call.1} parent=1 // pred_check_branch
      %23 = sbr.rel (0) target = $region5
    $region4: #{tpu_custom_call.1} parent=1 // pred_region
      %s25 = ssub.s32 128, 128
      %26 = vsyncadd [#allocation3], %s25
      %s27 = sshll.u32 [#allocation2], 4
      %s28 = int_to_ptr.vmem [resolvable:$true] %s27
      %33 = dma.hbm_to_vmem [thread:$0]  %s0, 128, %s28, [#allocation3], 64, 64, 4
    $region5: #{tpu_custom_call.1} parent=1 // pred_fallthru
      _
    // Predicated region
    $region6: #{tpu_custom_call.1} parent=1 // pred_check
      _
    $region7: #{tpu_custom_call.1} parent=1 // pred_check_branch
      %35 = sbr.rel (0) target = $region9
    $region8: #{tpu_custom_call.1} parent=1 // pred_region
      %s37 = ssub.s32 2048, 2048
      %38 = vsyncadd [#allocation6], %s37
      %s39 = sshll.u32 [#allocation5], 4
      %s40 = int_to_ptr.vmem [resolvable:$true] %s39
      %45 = dma.hbm_to_vmem [thread:$0]  %s1, 2048, %s40, [#allocation6], 512, 512, 32
    $region9: #{tpu_custom_call.1} parent=1 // pred_fallthru
      _
    // Predicated region
    $region10: #{tpu_custom_call.1} parent=1 // pred_check
      _
    $region11: #{tpu_custom_call.1} parent=1 // pred_check_branch
      %47 = sbr.rel (0) target = $region13
    $region12: #{tpu_custom_call.1} parent=1 // pred_region
      %s49 = ssub.s32 128, 128
      %50 = vsyncadd [#allocation6], %s49
      %s52 = sshll.u32 [#allocation7], 4
      %s53 = int_to_ptr.vmem [resolvable:$true] %s52
      %55 = dma.hbm_to_vmem [thread:$0]  %s2, 128, %s53, [#allocation6]
    $region13: #{tpu_custom_call.1} parent=1 // pred_fallthru
      _
    // Predicated region
    $region14: #{tpu_custom_call.1} parent=1 // pred_check
      _
    $region15: #{tpu_custom_call.1} parent=1 // pred_check_branch
      %57 = sbr.rel (0) target = $region17
    $region16: #{tpu_custom_call.1} parent=1 // pred_region
      %s59 = ssub.s32 16384, 16384
      %60 = vsyncadd [#allocation9], %s59
      %s61 = sshll.u32 [#allocation8], 4
      %s62 = int_to_ptr.vmem [resolvable:$true] %s61
      %67 = dma.hbm_to_vmem [thread:$0]  %s3, 16384, %s62, [#allocation9], 256, 256, 16
    $region17: #{tpu_custom_call.1} parent=1 // pred_fallthru
      _
    // Predicated region
    $region18: #{tpu_custom_call.1} parent=1 // pred_check
      _
    $region19: #{tpu_custom_call.1} parent=1 // pred_check_branch
      %69 = sbr.rel (0) target = $region21
    $region20: #{tpu_custom_call.1} parent=1 // pred_region
      %s71 = ssub.s32 64, 64
      %72 = vsyncadd [#allocation9], %s71
      %s74 = sshll.u32 [#allocation10], 4
      %s75 = int_to_ptr.vmem [resolvable:$true] %s74
      %77 = dma.hbm_to_vmem [thread:$0]  %s4, 64, %s75, [#allocation9]
    $region21: #{tpu_custom_call.1} parent=1 // pred_fallthru
      _
    // Predicated region
    $region22: #{tpu_custom_call.1} parent=1 // pred_check
      _
    $region23: #{tpu_custom_call.1} parent=1 // pred_check_branch
      %79 = sbr.rel (0) target = $region25
    $region24: #{tpu_custom_call.1} parent=1 // pred_region
      %s81 = ssub.s32 16384, 16384
      %82 = vsyncadd [#allocation12], %s81
      %s83 = sshll.u32 [#allocation11], 4
      %s84 = int_to_ptr.vmem [resolvable:$true] %s83
      %89 = dma.hbm_to_vmem [thread:$0]  %s5, 16384, %s84, [#allocation12], 256, 256, 16
    $region25: #{tpu_custom_call.1} parent=1 // pred_fallthru
      _
    // Predicated region
    $region26: #{tpu_custom_call.1} parent=1 // pred_check
      _
    $region27: #{tpu_custom_call.1} parent=1 // pred_check_branch
      %91 = sbr.rel (0) target = $region29
    $region28: #{tpu_custom_call.1} parent=1 // pred_region
      %s93 = ssub.s32 64, 64
      %94 = vsyncadd [#allocation12], %s93
      %s96 = sshll.u32 [#allocation13], 4
      %s97 = int_to_ptr.vmem [resolvable:$true] %s96
      %99 = dma.hbm_to_vmem [thread:$0]  %s6, 64, %s97, [#allocation12]
    $region29: #{tpu_custom_call.1} parent=1 // pred_fallthru
      _
    // Predicated region
    $region30: #{tpu_custom_call.1} parent=1 // pred_check
      _
    $region31: #{tpu_custom_call.1} parent=1 // pred_check_branch
      %101 = sbr.rel (0) target = $region33
    $region32: #{tpu_custom_call.1} parent=1 // pred_region
      %s103 = ssub.s32 4096, 4096
      %104 = vsyncadd [#allocation15], %s103
      %s105 = sshll.u32 [#allocation14], 4
      %s106 = int_to_ptr.vmem [resolvable:$true] %s105
      %111 = dma.hbm_to_vmem [thread:$0]  %s7, 4096, %s106, [#allocation15], 64, 64, 4
    $region33: #{tpu_custom_call.1} parent=1 // pred_fallthru
      _
    // Predicated region
    $region34: #{tpu_custom_call.1} parent=1 // pred_check
      _
    $region35: #{tpu_custom_call.1} parent=1 // pred_check_branch
      %113 = sbr.rel (0) target = $region37
    $region36: #{tpu_custom_call.1} parent=1 // pred_region
      %s115 = ssub.s32 4096, 4096
      %116 = vsyncadd [#allocation15], %s115
      %s117 = sshll.u32 [#allocation16], 4
      %s118 = int_to_ptr.vmem [resolvable:$true] %s117
      %123 = dma.hbm_to_vmem [thread:$0]  %s8, 4096, %s118, [#allocation15], 64, 64, 4
    $region37: #{tpu_custom_call.1} parent=1 // pred_fallthru
      _
    // Predicated region
    $region38: #{tpu_custom_call.1} parent=1 // pred_check
      _
    $region39: #{tpu_custom_call.1} parent=1 // pred_check_branch
      %125 = sbr.rel (0) target = $region41
    $region40: #{tpu_custom_call.1} parent=1 // pred_region
      %s127 = ssub.s32 16, 16
      %128 = vsyncadd [#allocation18], %s127
      %s130 = sshll.u32 [#allocation17], 4
      %s131 = int_to_ptr.vmem [resolvable:$true] %s130
      %133 = dma.hbm_to_vmem [thread:$0]  %s9, 16, %s131, [#allocation18]
    $region41: #{tpu_custom_call.1} parent=1 // pred_fallthru
      _
    // Predicated region
    $region42: #{tpu_custom_call.1} parent=1 // pred_check
      _
    $region43: #{tpu_custom_call.1} parent=1 // pred_check_branch
      %135 = sbr.rel (0) target = $region45
    $region44: #{tpu_custom_call.1} parent=1 // pred_region
      %136 = dma.done [#allocation3], 128
    $region45: #{tpu_custom_call.1} parent=1 // pred_fallthru
      _
    // Predicated region
    $region46: #{tpu_custom_call.1} parent=1 // pred_check
      _
    $region47: #{tpu_custom_call.1} parent=1 // pred_check_branch
      %138 = sbr.rel (0) target = $region49
    $region48: #{tpu_custom_call.1} parent=1 // pred_region
      %139 = dma.done [#allocation6], 2048
    $region49: #{tpu_custom_call.1} parent=1 // pred_fallthru
      _
    // Predicated region
    $region50: #{tpu_custom_call.1} parent=1 // pred_check
      _
    $region51: #{tpu_custom_call.1} parent=1 // pred_check_branch
      %141 = sbr.rel (0) target = $region53
    $region52: #{tpu_custom_call.1} parent=1 // pred_region
      %142 = dma.done [#allocation6], 128
    $region53: #{tpu_custom_call.1} parent=1 // pred_fallthru
      _
    // Predicated region
    $region54: #{tpu_custom_call.1} parent=1 // pred_check
      _
    $region55: #{tpu_custom_call.1} parent=1 // pred_check_branch
      %144 = sbr.rel (0) target = $region57
    $region56: #{tpu_custom_call.1} parent=1 // pred_region
      %145 = dma.done [#allocation9], 16384
    $region57: #{tpu_custom_call.1} parent=1 // pred_fallthru
      _
    // Predicated region
    $region58: #{tpu_custom_call.1} parent=1 // pred_check
      _
    $region59: #{tpu_custom_call.1} parent=1 // pred_check_branch
      %147 = sbr.rel (0) target = $region61
    $region60: #{tpu_custom_call.1} parent=1 // pred_region
      %148 = dma.done [#allocation9], 64
    $region61: #{tpu_custom_call.1} parent=1 // pred_fallthru
      _
    // Predicated region
    $region62: #{tpu_custom_call.1} parent=1 // pred_check
      _
    $region63: #{tpu_custom_call.1} parent=1 // pred_check_branch
      %150 = sbr.rel (0) target = $region65
    $region64: #{tpu_custom_call.1} parent=1 // pred_region
      %151 = dma.done [#allocation12], 16384
    $region65: #{tpu_custom_call.1} parent=1 // pred_fallthru
      _
    // Predicated region
    $region66: #{tpu_custom_call.1} parent=1 // pred_check
      _
    $region67: #{tpu_custom_call.1} parent=1 // pred_check_branch
      %153 = sbr.rel (0) target = $region69
    $region68: #{tpu_custom_call.1} parent=1 // pred_region
      %154 = dma.done [#allocation12], 64
    $region69: #{tpu_custom_call.1} parent=1 // pred_fallthru
      _
    // Predicated region
    $region70: #{tpu_custom_call.1} parent=1 // pred_check
      _
    $region71: #{tpu_custom_call.1} parent=1 // pred_check_branch
      %156 = sbr.rel (0) target = $region73
    $region72: #{tpu_custom_call.1} parent=1 // pred_region
      %157 = dma.done [#allocation15], 4096
    $region73: #{tpu_custom_call.1} parent=1 // pred_fallthru
      _
    // Predicated region
    $region74: #{tpu_custom_call.1} parent=1 // pred_check
      _
    $region75: #{tpu_custom_call.1} parent=1 // pred_check_branch
      %159 = sbr.rel (0) target = $region77
    $region76: #{tpu_custom_call.1} parent=1 // pred_region
      %160 = dma.done [#allocation15], 4096
    $region77: #{tpu_custom_call.1} parent=1 // pred_fallthru
      _
    // Predicated region
    $region78: #{tpu_custom_call.1} parent=1 // pred_check
      _
    $region79: #{tpu_custom_call.1} parent=1 // pred_check_branch
      %162 = sbr.rel (0) target = $region81
    $region80: #{tpu_custom_call.1} parent=1 // pred_region
      %163 = dma.done [#allocation18], 16
    $region81: #{tpu_custom_call.1} parent=1 // pred_fallthru
      _
    %v165 = vld [vmem:[#allocation2] sm:$0xf]
    %v166 = vld [vmem:[#allocation2 + $0x4] sm:$0xf]
    %v167 = vld [vmem:[#allocation5] sm:$0xff]
    %v168 = vld [vmem:[#allocation5 + $0x8] sm:$0xff]
    %v169 = vld [vmem:[#allocation5 + $0x10] sm:$0xff]
    %v170 = vld [vmem:[#allocation5 + $0x18] sm:$0xff]
    %v171 = vld [vmem:[#allocation5 + $0x20] sm:$0xff]
    %v172 = vld [vmem:[#allocation5 + $0x28] sm:$0xff]
    %v173 = vld [vmem:[#allocation5 + $0x30] sm:$0xff]
    %v174 = vld [vmem:[#allocation5 + $0x38] sm:$0xff]
    %v175 = vld [vmem:[#allocation5 + $0x40] sm:$0xff]
    %v176 = vld [vmem:[#allocation5 + $0x48] sm:$0xff]
    %v177 = vld [vmem:[#allocation5 + $0x50] sm:$0xff]
    %v178 = vld [vmem:[#allocation5 + $0x58] sm:$0xff]
    %v179 = vld [vmem:[#allocation5 + $0x60] sm:$0xff]
    %v180 = vld [vmem:[#allocation5 + $0x68] sm:$0xff]
    %v181 = vld [vmem:[#allocation5 + $0x70] sm:$0xff]
    %v182 = vld [vmem:[#allocation5 + $0x78] sm:$0xff]
    %v183 = vld [vmem:[#allocation7] sm:$0xff]
    %v185 = vlaneseq
    %v186 = vshrl.u32 %v185, 7
    %v187 = vsub.s32 0, %v186
    %v188 = vrot.slane %v183, %v187
    %v189 = vlaneseq
    %v190 = vshrl.u32 %v189, 7
    %v191 = vsub.s32 1, %v190
    %v192 = vrot.slane %v183, %v191
    %v193 = vlaneseq
    %v194 = vshrl.u32 %v193, 7
    %v195 = vsub.s32 2, %v194
    %v196 = vrot.slane %v183, %v195
    %v197 = vlaneseq
    %v198 = vshrl.u32 %v197, 7
    %v199 = vsub.s32 3, %v198
    %v200 = vrot.slane %v183, %v199
    %v201 = vlaneseq
    %v202 = vshrl.u32 %v201, 7
    %v203 = vsub.s32 4, %v202
    %v204 = vrot.slane %v183, %v203
    %v205 = vlaneseq
    %v206 = vshrl.u32 %v205, 7
    %v207 = vsub.s32 5, %v206
    %v208 = vrot.slane %v183, %v207
    %v209 = vlaneseq
    %v210 = vshrl.u32 %v209, 7
    %v211 = vsub.s32 6, %v210
    %v212 = vrot.slane %v183, %v211
    %v213 = vlaneseq
    %v214 = vshrl.u32 %v213, 7
    %v215 = vsub.s32 7, %v214
    %v216 = vrot.slane %v183, %v215
    %v227 = vunpack.c.l.b16 %v165
    %v228 = vunpack.c.l.b16 %v166
    %v229 = vpack.c.b16 %v228, %v227
    %v246 = vunpack.c.l.b16 %v167
    %v247 = vunpack.c.h.b16 %v167
    %v248 = vunpack.c.l.b16 %v168
    %v249 = vunpack.c.h.b16 %v168
    %v250 = vunpack.c.l.b16 %v169
    %v251 = vunpack.c.h.b16 %v169
    %v252 = vunpack.c.l.b16 %v170
    %v253 = vunpack.c.h.b16 %v170
    %v254 = vunpack.c.l.b16 %v171
    %v255 = vunpack.c.h.b16 %v171
    %v256 = vunpack.c.l.b16 %v172
    %v257 = vunpack.c.h.b16 %v172
    %v258 = vunpack.c.l.b16 %v173
    %v259 = vunpack.c.h.b16 %v173
    %v260 = vunpack.c.l.b16 %v174
    %v261 = vunpack.c.h.b16 %v174
    %v262 = vunpack.c.l.b16 %v175
    %v263 = vunpack.c.h.b16 %v175
    %v264 = vunpack.c.l.b16 %v176
    %v265 = vunpack.c.h.b16 %v176
    %v266 = vunpack.c.l.b16 %v177
    %v267 = vunpack.c.h.b16 %v177
    %v268 = vunpack.c.l.b16 %v178
    %v269 = vunpack.c.h.b16 %v178
    %v270 = vunpack.c.l.b16 %v179
    %v271 = vunpack.c.h.b16 %v179
    %v272 = vunpack.c.l.b16 %v180
    %v273 = vunpack.c.h.b16 %v180
    %v274 = vunpack.c.l.b16 %v181
    %v275 = vunpack.c.h.b16 %v181
    %v276 = vunpack.c.l.b16 %v182
    %v277 = vunpack.c.h.b16 %v182
    %v278 = vpack.c.b16 %v254, %v246
    %v279 = vpack.c.b16 %v255, %v247
    %v280 = vpack.c.b16 %v256, %v248
    %v281 = vpack.c.b16 %v257, %v249
    %v282 = vpack.c.b16 %v258, %v250
    %v283 = vpack.c.b16 %v259, %v251
    %v284 = vpack.c.b16 %v260, %v252
    %v285 = vpack.c.b16 %v261, %v253
    %v286 = vpack.c.b16 %v270, %v262
    %v287 = vpack.c.b16 %v271, %v263
    %v288 = vpack.c.b16 %v272, %v264
    %v289 = vpack.c.b16 %v273, %v265
    %v290 = vpack.c.b16 %v274, %v266
    %v291 = vpack.c.b16 %v275, %v267
    %v292 = vpack.c.b16 %v276, %v268
    %v293 = vpack.c.b16 %v277, %v269
    %vm310 = vcmask 261120
    %v312 = vsel %vm310, %v229, 0
    %314 = vmatprep.subr.bf16.mxu0 %v279
    %315 = vmatpush1.bf16.msra.mxu0 %v278
    %316 = vmatprep.subr.bf16.mxu0 %v287
    %317 = vmatpush1.bf16.msra.mxu0 %v286
    %318 = vmatprep.subr.bf16.mxu0 0
    %319 = vmatpush1.bf16.msra.mxu0 0
    %320 = vmatprep.subr.bf16.mxu0 0
    %321 = vmatpush1.bf16.msra.mxu0 0
    %322 = vmatprep.subr.bf16.mxu0 0
    %323 = vmatpush1.bf16.msra.mxu0 0
    %324 = vmatprep.subr.bf16.mxu0 0
    %325 = vmatpush1.bf16.msra.mxu0 0
    %326 = vmatprep.subr.bf16.mxu0 0
    %327 = vmatpush1.bf16.msra.mxu0 0
    %328 = vmatprep.subr.bf16.mxu0 0
    %329 = vmatpush1.bf16.msra.mxu0 0
    %330 = vmatprep.subr.bf16.mxu0 0
    %331 = vmatpush1.bf16.msra.mxu0 0
    %332 = vmatprep.subr.bf16.mxu0 0
    %333 = vmatpush1.bf16.msra.mxu0 0
    %334 = vmatprep.subr.bf16.mxu0 0
    %335 = vmatpush1.bf16.msra.mxu0 0
    %336 = vmatprep.subr.bf16.mxu0 0
    %337 = vmatpush1.bf16.msra.mxu0 0
    %338 = vmatprep.subr.bf16.mxu0 0
    %339 = vmatpush1.bf16.msra.mxu0 0
    %340 = vmatprep.subr.bf16.mxu0 0
    %341 = vmatpush1.bf16.msra.mxu0 0
    %342 = vmatprep.subr.bf16.mxu0 0
    %343 = vmatpush1.bf16.msra.mxu0 0
    %344 = vmatprep.subr.bf16.mxu0 0
    %345 = vmatpush1.bf16.msra.mxu0 0
    %346 = vmatprep.mubr.bf16.mxu0 0
    %347 = vmatmul.mubr.bf16.gmra.mrb[0].mxu0 %v312
    %v348 = vpop.f32.mrb[0].mxu0
    %v349 = vadd.f32 %v188, %v348
    %v350 = vpop.f32.mrb[0].mxu0
    %v351 = vadd.f32 %v192, %v350
    %v352 = vpop.f32.mrb[0].mxu0
    %v353 = vadd.f32 %v188, %v352
    %v354 = vpop.f32.mrb[0].mxu0
    %v355 = vadd.f32 %v192, %v354
    %356 = vdwg.mxu0
    %357 = vmatprep.subr.bf16.mxu0 %v281
    %358 = vmatpush1.bf16.msra.mxu0 %v280
    %359 = vmatprep.subr.bf16.mxu0 %v289
    %360 = vmatpush1.bf16.msra.mxu0 %v288
    %361 = vmatprep.subr.bf16.mxu0 0
    %362 = vmatpush1.bf16.msra.mxu0 0
    %363 = vmatprep.subr.bf16.mxu0 0
    %364 = vmatpush1.bf16.msra.mxu0 0
    %365 = vmatprep.subr.bf16.mxu0 0
    %366 = vmatpush1.bf16.msra.mxu0 0
    %367 = vmatprep.subr.bf16.mxu0 0
    %368 = vmatpush1.bf16.msra.mxu0 0
    %369 = vmatprep.subr.bf16.mxu0 0
    %370 = vmatpush1.bf16.msra.mxu0 0
    %371 = vmatprep.subr.bf16.mxu0 0
    %372 = vmatpush1.bf16.msra.mxu0 0
    %373 = vmatprep.subr.bf16.mxu0 0
    %374 = vmatpush1.bf16.msra.mxu0 0
    %375 = vmatprep.subr.bf16.mxu0 0
    %376 = vmatpush1.bf16.msra.mxu0 0
    %377 = vmatprep.subr.bf16.mxu0 0
    %378 = vmatpush1.bf16.msra.mxu0 0
    %379 = vmatprep.subr.bf16.mxu0 0
    %380 = vmatpush1.bf16.msra.mxu0 0
    %381 = vmatprep.subr.bf16.mxu0 0
    %382 = vmatpush1.bf16.msra.mxu0 0
    %383 = vmatprep.subr.bf16.mxu0 0
    %384 = vmatpush1.bf16.msra.mxu0 0
    %385 = vmatprep.subr.bf16.mxu0 0
    %386 = vmatpush1.bf16.msra.mxu0 0
    %387 = vmatprep.subr.bf16.mxu0 0
    %388 = vmatpush1.bf16.msra.mxu0 0
    %389 = vmatprep.mubr.bf16.mxu0 0
    %390 = vmatmul.mubr.bf16.gmra.mrb[0].mxu0 %v312
    %v391 = vpop.f32.mrb[0].mxu0
    %v392 = vadd.f32 %v196, %v391
    %v393 = vpop.f32.mrb[0].mxu0
    %v394 = vadd.f32 %v200, %v393
    %v395 = vpop.f32.mrb[0].mxu0
    %v396 = vadd.f32 %v196, %v395
    %v397 = vpop.f32.mrb[0].mxu0
    %v398 = vadd.f32 %v200, %v397
    %399 = vdwg.mxu0
    %400 = vmatprep.subr.bf16.mxu0 %v283
    %401 = vmatpush1.bf16.msra.mxu0 %v282
    %402 = vmatprep.subr.bf16.mxu0 %v291
    %403 = vmatpush1.bf16.msra.mxu0 %v290
    %404 = vmatprep.subr.bf16.mxu0 0
    %405 = vmatpush1.bf16.msra.mxu0 0
    %406 = vmatprep.subr.bf16.mxu0 0
    %407 = vmatpush1.bf16.msra.mxu0 0
    %408 = vmatprep.subr.bf16.mxu0 0
    %409 = vmatpush1.bf16.msra.mxu0 0
    %410 = vmatprep.subr.bf16.mxu0 0
    %411 = vmatpush1.bf16.msra.mxu0 0
    %412 = vmatprep.subr.bf16.mxu0 0
    %413 = vmatpush1.bf16.msra.mxu0 0
    %414 = vmatprep.subr.bf16.mxu0 0
    %415 = vmatpush1.bf16.msra.mxu0 0
    %416 = vmatprep.subr.bf16.mxu0 0
    %417 = vmatpush1.bf16.msra.mxu0 0
    %418 = vmatprep.subr.bf16.mxu0 0
    %419 = vmatpush1.bf16.msra.mxu0 0
    %420 = vmatprep.subr.bf16.mxu0 0
    %421 = vmatpush1.bf16.msra.mxu0 0
    %422 = vmatprep.subr.bf16.mxu0 0
    %423 = vmatpush1.bf16.msra.mxu0 0
    %424 = vmatprep.subr.bf16.mxu0 0
    %425 = vmatpush1.bf16.msra.mxu0 0
    %426 = vmatprep.subr.bf16.mxu0 0
    %427 = vmatpush1.bf16.msra.mxu0 0
    %428 = vmatprep.subr.bf16.mxu0 0
    %429 = vmatpush1.bf16.msra.mxu0 0
    %430 = vmatprep.subr.bf16.mxu0 0
    %431 = vmatpush1.bf16.msra.mxu0 0
    %432 = vmatprep.mubr.bf16.mxu0 0
    %433 = vmatmul.mubr.bf16.gmra.mrb[0].mxu0 %v312
    %v434 = vpop.f32.mrb[0].mxu0
    %v435 = vadd.f32 %v204, %v434
    %v436 = vpop.f32.mrb[0].mxu0
    %v437 = vadd.f32 %v208, %v436
    %v438 = vpop.f32.mrb[0].mxu0
    %v439 = vadd.f32 %v204, %v438
    %v440 = vpop.f32.mrb[0].mxu0
    %v441 = vadd.f32 %v208, %v440
    %442 = vdwg.mxu0
    %443 = vmatprep.subr.bf16.mxu0 %v285
    %444 = vmatpush1.bf16.msra.mxu0 %v284
    %445 = vmatprep.subr.bf16.mxu0 %v293
    %446 = vmatpush1.bf16.msra.mxu0 %v292
    %447 = vmatprep.subr.bf16.mxu0 0
    %448 = vmatpush1.bf16.msra.mxu0 0
    %449 = vmatprep.subr.bf16.mxu0 0
    %450 = vmatpush1.bf16.msra.mxu0 0
    %451 = vmatprep.subr.bf16.mxu0 0
    %452 = vmatpush1.bf16.msra.mxu0 0
    %453 = vmatprep.subr.bf16.mxu0 0
    %454 = vmatpush1.bf16.msra.mxu0 0
    %455 = vmatprep.subr.bf16.mxu0 0
    %456 = vmatpush1.bf16.msra.mxu0 0
    %457 = vmatprep.subr.bf16.mxu0 0
    %458 = vmatpush1.bf16.msra.mxu0 0
    %459 = vmatprep.subr.bf16.mxu0 0
    %460 = vmatpush1.bf16.msra.mxu0 0
    %461 = vmatprep.subr.bf16.mxu0 0
    %462 = vmatpush1.bf16.msra.mxu0 0
    %463 = vmatprep.subr.bf16.mxu0 0
    %464 = vmatpush1.bf16.msra.mxu0 0
    %465 = vmatprep.subr.bf16.mxu0 0
    %466 = vmatpush1.bf16.msra.mxu0 0
    %467 = vmatprep.subr.bf16.mxu0 0
    %468 = vmatpush1.bf16.msra.mxu0 0
    %469 = vmatprep.subr.bf16.mxu0 0
    %470 = vmatpush1.bf16.msra.mxu0 0
    %471 = vmatprep.subr.bf16.mxu0 0
    %472 = vmatpush1.bf16.msra.mxu0 0
    %473 = vmatprep.subr.bf16.mxu0 0
    %474 = vmatpush1.bf16.msra.mxu0 0
    %475 = vmatprep.mubr.bf16.mxu0 0
    %476 = vmatmul.mubr.bf16.gmra.mrb[0].mxu0 %v312
    %v477 = vpop.f32.mrb[0].mxu0
    %v478 = vadd.f32 %v212, %v477
    %v479 = vpop.f32.mrb[0].mxu0
    %v480 = vadd.f32 %v216, %v479
    %v481 = vpop.f32.mrb[0].mxu0
    %v482 = vadd.f32 %v212, %v481
    %v483 = vpop.f32.mrb[0].mxu0
    %v484 = vadd.f32 %v216, %v483
    %485 = vdwg.mxu0
    %v486 = vpack.c.bf16 %v353, %v349
    %v487 = vpack.c.bf16 %v355, %v351
    %v488 = vpack.c.bf16 %v396, %v392
    %v489 = vpack.c.bf16 %v398, %v394
    %v490 = vpack.c.bf16 %v439, %v435
    %v491 = vpack.c.bf16 %v441, %v437
    %v492 = vpack.c.bf16 %v482, %v478
    %v493 = vpack.c.bf16 %v484, %v480
    %v494 = vtanh.bf16.pop %v486
    %v495 = vtanh.bf16.pop %v487
    %v496 = vtanh.bf16.pop %v488
    %v497 = vtanh.bf16.pop %v489
    %v498 = vtanh.bf16.pop %v490
    %v499 = vtanh.bf16.pop %v491
    %v500 = vtanh.bf16.pop %v492
    %v501 = vtanh.bf16.pop %v493
    %v502 = vld [vmem:[#allocation8] sm:$0xff]
    %v503 = vld [vmem:[#allocation8 + $0x8] sm:$0xff]
    %v504 = vld [vmem:[#allocation8 + $0x10] sm:$0xff]
    %v505 = vld [vmem:[#allocation8 + $0x18] sm:$0xff]
    %v506 = vld [vmem:[#allocation8 + $0x20] sm:$0xff]
    %v507 = vld [vmem:[#allocation8 + $0x28] sm:$0xff]
    %v508 = vld [vmem:[#allocation8 + $0x30] sm:$0xff]
    %v509 = vld [vmem:[#allocation8 + $0x38] sm:$0xff]
    %v510 = vld [vmem:[#allocation8 + $0x40] sm:$0xff]
    %v511 = vld [vmem:[#allocation8 + $0x48] sm:$0xff]
    %v512 = vld [vmem:[#allocation8 + $0x50] sm:$0xff]
    %v513 = vld [vmem:[#allocation8 + $0x58] sm:$0xff]
    %v514 = vld [vmem:[#allocation8 + $0x60] sm:$0xff]
    %v515 = vld [vmem:[#allocation8 + $0x68] sm:$0xff]
    %v516 = vld [vmem:[#allocation8 + $0x70] sm:$0xff]
    %v517 = vld [vmem:[#allocation8 + $0x78] sm:$0xff]
    %v518 = vld [vmem:[#allocation8 + $0x80] sm:$0xff]
    %v519 = vld [vmem:[#allocation8 + $0x88] sm:$0xff]
    %v520 = vld [vmem:[#allocation8 + $0x90] sm:$0xff]
    %v521 = vld [vmem:[#allocation8 + $0x98] sm:$0xff]
    %v522 = vld [vmem:[#allocation8 + $0xa0] sm:$0xff]
    %v523 = vld [vmem:[#allocation8 + $0xa8] sm:$0xff]
    %v524 = vld [vmem:[#allocation8 + $0xb0] sm:$0xff]
    %v525 = vld [vmem:[#allocation8 + $0xb8] sm:$0xff]
    %v526 = vld [vmem:[#allocation8 + $0xc0] sm:$0xff]
    %v527 = vld [vmem:[#allocation8 + $0xc8] sm:$0xff]
    %v528 = vld [vmem:[#allocation8 + $0xd0] sm:$0xff]
    %v529 = vld [vmem:[#allocation8 + $0xd8] sm:$0xff]
    %v530 = vld [vmem:[#allocation8 + $0xe0] sm:$0xff]
    %v531 = vld [vmem:[#allocation8 + $0xe8] sm:$0xff]
    %v532 = vld [vmem:[#allocation8 + $0xf0] sm:$0xff]
    %v533 = vld [vmem:[#allocation8 + $0xf8] sm:$0xff]
    %v534 = vld [vmem:[#allocation8 + $0x100] sm:$0xff]
    %v535 = vld [vmem:[#allocation8 + $0x108] sm:$0xff]
    %v536 = vld [vmem:[#allocation8 + $0x110] sm:$0xff]
    %v537 = vld [vmem:[#allocation8 + $0x118] sm:$0xff]
    %v538 = vld [vmem:[#allocation8 + $0x120] sm:$0xff]
    %v539 = vld [vmem:[#allocation8 + $0x128] sm:$0xff]
    %v540 = vld [vmem:[#allocation8 + $0x130] sm:$0xff]
    %v541 = vld [vmem:[#allocation8 + $0x138] sm:$0xff]
    %v542 = vld [vmem:[#allocation8 + $0x140] sm:$0xff]
    %v543 = vld [vmem:[#allocation8 + $0x148] sm:$0xff]
    %v544 = vld [vmem:[#allocation8 + $0x150] sm:$0xff]
    %v545 = vld [vmem:[#allocation8 + $0x158] sm:$0xff]
    %v546 = vld [vmem:[#allocation8 + $0x160] sm:$0xff]
    %v547 = vld [vmem:[#allocation8 + $0x168] sm:$0xff]
    %v548 = vld [vmem:[#allocation8 + $0x170] sm:$0xff]
    %v549 = vld [vmem:[#allocation8 + $0x178] sm:$0xff]
    %v550 = vld [vmem:[#allocation8 + $0x180] sm:$0xff]
    %v551 = vld [vmem:[#allocation8 + $0x188] sm:$0xff]
    %v552 = vld [vmem:[#allocation8 + $0x190] sm:$0xff]
    %v553 = vld [vmem:[#allocation8 + $0x198] sm:$0xff]
    %v554 = vld [vmem:[#allocation8 + $0x1a0] sm:$0xff]
    %v555 = vld [vmem:[#allocation8 + $0x1a8] sm:$0xff]
    %v556 = vld [vmem:[#allocation8 + $0x1b0] sm:$0xff]
    %v557 = vld [vmem:[#allocation8 + $0x1b8] sm:$0xff]
    %v558 = vld [vmem:[#allocation8 + $0x1c0] sm:$0xff]
    %v559 = vld [vmem:[#allocation8 + $0x1c8] sm:$0xff]
    %v560 = vld [vmem:[#allocation8 + $0x1d0] sm:$0xff]
    %v561 = vld [vmem:[#allocation8 + $0x1d8] sm:$0xff]
    %v562 = vld [vmem:[#allocation8 + $0x1e0] sm:$0xff]
    %v563 = vld [vmem:[#allocation8 + $0x1e8] sm:$0xff]
    %v564 = vld [vmem:[#allocation8 + $0x1f0] sm:$0xff]
    %v565 = vld [vmem:[#allocation8 + $0x1f8] sm:$0xff]
    %v566 = vld [vmem:[#allocation8 + $0x200] sm:$0xff]
    %v567 = vld [vmem:[#allocation8 + $0x208] sm:$0xff]
    %v568 = vld [vmem:[#allocation8 + $0x210] sm:$0xff]
    %v569 = vld [vmem:[#allocation8 + $0x218] sm:$0xff]
    %v570 = vld [vmem:[#allocation8 + $0x220] sm:$0xff]
    %v571 = vld [vmem:[#allocation8 + $0x228] sm:$0xff]
    %v572 = vld [vmem:[#allocation8 + $0x230] sm:$0xff]
    %v573 = vld [vmem:[#allocation8 + $0x238] sm:$0xff]
    %v574 = vld [vmem:[#allocation8 + $0x240] sm:$0xff]
    %v575 = vld [vmem:[#allocation8 + $0x248] sm:$0xff]
    %v576 = vld [vmem:[#allocation8 + $0x250] sm:$0xff]
    %v577 = vld [vmem:[#allocation8 + $0x258] sm:$0xff]
    %v578 = vld [vmem:[#allocation8 + $0x260] sm:$0xff]
    %v579 = vld [vmem:[#allocation8 + $0x268] sm:$0xff]
    %v580 = vld [vmem:[#allocation8 + $0x270] sm:$0xff]
    %v581 = vld [vmem:[#allocation8 + $0x278] sm:$0xff]
    %v582 = vld [vmem:[#allocation8 + $0x280] sm:$0xff]
    %v583 = vld [vmem:[#allocation8 + $0x288] sm:$0xff]
    %v584 = vld [vmem:[#allocation8 + $0x290] sm:$0xff]
    %v585 = vld [vmem:[#allocation8 + $0x298] sm:$0xff]
    %v586 = vld [vmem:[#allocation8 + $0x2a0] sm:$0xff]
    %v587 = vld [vmem:[#allocation8 + $0x2a8] sm:$0xff]
    %v588 = vld [vmem:[#allocation8 + $0x2b0] sm:$0xff]
    %v589 = vld [vmem:[#allocation8 + $0x2b8] sm:$0xff]
    %v590 = vld [vmem:[#allocation8 + $0x2c0] sm:$0xff]
    %v591 = vld [vmem:[#allocation8 + $0x2c8] sm:$0xff]
    %v592 = vld [vmem:[#allocation8 + $0x2d0] sm:$0xff]
    %v593 = vld [vmem:[#allocation8 + $0x2d8] sm:$0xff]
    %v594 = vld [vmem:[#allocation8 + $0x2e0] sm:$0xff]
    %v595 = vld [vmem:[#allocation8 + $0x2e8] sm:$0xff]
    %v596 = vld [vmem:[#allocation8 + $0x2f0] sm:$0xff]
    %v597 = vld [vmem:[#allocation8 + $0x2f8] sm:$0xff]
    %v598 = vld [vmem:[#allocation8 + $0x300] sm:$0xff]
    %v599 = vld [vmem:[#allocation8 + $0x308] sm:$0xff]
    %v600 = vld [vmem:[#allocation8 + $0x310] sm:$0xff]
    %v601 = vld [vmem:[#allocation8 + $0x318] sm:$0xff]
    %v602 = vld [vmem:[#allocation8 + $0x320] sm:$0xff]
    %v603 = vld [vmem:[#allocation8 + $0x328] sm:$0xff]
    %v604 = vld [vmem:[#allocation8 + $0x330] sm:$0xff]
    %v605 = vld [vmem:[#allocation8 + $0x338] sm:$0xff]
    %v606 = vld [vmem:[#allocation8 + $0x340] sm:$0xff]
    %v607 = vld [vmem:[#allocation8 + $0x348] sm:$0xff]
    %v608 = vld [vmem:[#allocation8 + $0x350] sm:$0xff]
    %v609 = vld [vmem:[#allocation8 + $0x358] sm:$0xff]
    %v610 = vld [vmem:[#allocation8 + $0x360] sm:$0xff]
    %v611 = vld [vmem:[#allocation8 + $0x368] sm:$0xff]
    %v612 = vld [vmem:[#allocation8 + $0x370] sm:$0xff]
    %v613 = vld [vmem:[#allocation8 + $0x378] sm:$0xff]
    %v614 = vld [vmem:[#allocation8 + $0x380] sm:$0xff]
    %v615 = vld [vmem:[#allocation8 + $0x388] sm:$0xff]
    %v616 = vld [vmem:[#allocation8 + $0x390] sm:$0xff]
    %v617 = vld [vmem:[#allocation8 + $0x398] sm:$0xff]
    %v618 = vld [vmem:[#allocation8 + $0x3a0] sm:$0xff]
    %v619 = vld [vmem:[#allocation8 + $0x3a8] sm:$0xff]
    %v620 = vld [vmem:[#allocation8 + $0x3b0] sm:$0xff]
    %v621 = vld [vmem:[#allocation8 + $0x3b8] sm:$0xff]
    %v622 = vld [vmem:[#allocation8 + $0x3c0] sm:$0xff]
    %v623 = vld [vmem:[#allocation8 + $0x3c8] sm:$0xff]
    %v624 = vld [vmem:[#allocation8 + $0x3d0] sm:$0xff]
    %v625 = vld [vmem:[#allocation8 + $0x3d8] sm:$0xff]
    %v626 = vld [vmem:[#allocation8 + $0x3e0] sm:$0xff]
    %v627 = vld [vmem:[#allocation8 + $0x3e8] sm:$0xff]
    %v628 = vld [vmem:[#allocation8 + $0x3f0] sm:$0xff]
    %v629 = vld [vmem:[#allocation8 + $0x3f8] sm:$0xff]
    %v630 = vld [vmem:[#allocation10] sm:$0xf]
    %v632 = vlaneseq
    %v633 = vshrl.u32 %v632, 7
    %v634 = vsub.s32 0, %v633
    %v635 = vrot.slane %v630, %v634
    %v636 = vlaneseq
    %v637 = vshrl.u32 %v636, 7
    %v638 = vsub.s32 1, %v637
    %v639 = vrot.slane %v630, %v638
    %v640 = vlaneseq
    %v641 = vshrl.u32 %v640, 7
    %v642 = vsub.s32 2, %v641
    %v643 = vrot.slane %v630, %v642
    %v644 = vlaneseq
    %v645 = vshrl.u32 %v644, 7
    %v646 = vsub.s32 3, %v645
    %v647 = vrot.slane %v630, %v646
    %v780 = vunpack.c.l.b16 %v502
    %v781 = vunpack.c.h.b16 %v502
    %v782 = vunpack.c.l.b16 %v503
    %v783 = vunpack.c.h.b16 %v503
    %v784 = vunpack.c.l.b16 %v504
    %v785 = vunpack.c.h.b16 %v504
    %v786 = vunpack.c.l.b16 %v505
    %v787 = vunpack.c.h.b16 %v505
    %v788 = vunpack.c.l.b16 %v506
    %v789 = vunpack.c.h.b16 %v506
    %v790 = vunpack.c.l.b16 %v507
    %v791 = vunpack.c.h.b16 %v507
    %v792 = vunpack.c.l.b16 %v508
    %v793 = vunpack.c.h.b16 %v508
    %v794 = vunpack.c.l.b16 %v509
    %v795 = vunpack.c.h.b16 %v509
    %v796 = vunpack.c.l.b16 %v510
    %v797 = vunpack.c.h.b16 %v510
    %v798 = vunpack.c.l.b16 %v511
    %v799 = vunpack.c.h.b16 %v511
    %v800 = vunpack.c.l.b16 %v512
    %v801 = vunpack.c.h.b16 %v512
    %v802 = vunpack.c.l.b16 %v513
    %v803 = vunpack.c.h.b16 %v513
    %v804 = vunpack.c.l.b16 %v514
    %v805 = vunpack.c.h.b16 %v514
    %v806 = vunpack.c.l.b16 %v515
    %v807 = vunpack.c.h.b16 %v515
    %v808 = vunpack.c.l.b16 %v516
    %v809 = vunpack.c.h.b16 %v516
    %v810 = vunpack.c.l.b16 %v517
    %v811 = vunpack.c.h.b16 %v517
    %v812 = vunpack.c.l.b16 %v518
    %v813 = vunpack.c.h.b16 %v518
    %v814 = vunpack.c.l.b16 %v519
    %v815 = vunpack.c.h.b16 %v519
    %v816 = vunpack.c.l.b16 %v520
    %v817 = vunpack.c.h.b16 %v520
    %v818 = vunpack.c.l.b16 %v521
    %v819 = vunpack.c.h.b16 %v521
    %v820 = vunpack.c.l.b16 %v522
    %v821 = vunpack.c.h.b16 %v522
    %v822 = vunpack.c.l.b16 %v523
    %v823 = vunpack.c.h.b16 %v523
    %v824 = vunpack.c.l.b16 %v524
    %v825 = vunpack.c.h.b16 %v524
    %v826 = vunpack.c.l.b16 %v525
    %v827 = vunpack.c.h.b16 %v525
    %v828 = vunpack.c.l.b16 %v526
    %v829 = vunpack.c.h.b16 %v526
    %v830 = vunpack.c.l.b16 %v527
    %v831 = vunpack.c.h.b16 %v527
    %v832 = vunpack.c.l.b16 %v528
    %v833 = vunpack.c.h.b16 %v528
    %v834 = vunpack.c.l.b16 %v529
    %v835 = vunpack.c.h.b16 %v529
    %v836 = vunpack.c.l.b16 %v530
    %v837 = vunpack.c.h.b16 %v530
    %v838 = vunpack.c.l.b16 %v531
    %v839 = vunpack.c.h.b16 %v531
    %v840 = vunpack.c.l.b16 %v532
    %v841 = vunpack.c.h.b16 %v532
    %v842 = vunpack.c.l.b16 %v533
    %v843 = vunpack.c.h.b16 %v533
    %v844 = vunpack.c.l.b16 %v534
    %v845 = vunpack.c.h.b16 %v534
    %v846 = vunpack.c.l.b16 %v535
    %v847 = vunpack.c.h.b16 %v535
    %v848 = vunpack.c.l.b16 %v536
    %v849 = vunpack.c.h.b16 %v536
    %v850 = vunpack.c.l.b16 %v537
    %v851 = vunpack.c.h.b16 %v537
    %v852 = vunpack.c.l.b16 %v538
    %v853 = vunpack.c.h.b16 %v538
    %v854 = vunpack.c.l.b16 %v539
    %v855 = vunpack.c.h.b16 %v539
    %v856 = vunpack.c.l.b16 %v540
    %v857 = vunpack.c.h.b16 %v540
    %v858 = vunpack.c.l.b16 %v541
    %v859 = vunpack.c.h.b16 %v541
    %v860 = vunpack.c.l.b16 %v542
    %v861 = vunpack.c.h.b16 %v542
    %v862 = vunpack.c.l.b16 %v543
    %v863 = vunpack.c.h.b16 %v543
    %v864 = vunpack.c.l.b16 %v544
    %v865 = vunpack.c.h.b16 %v544
    %v866 = vunpack.c.l.b16 %v545
    %v867 = vunpack.c.h.b16 %v545
    %v868 = vunpack.c.l.b16 %v546
    %v869 = vunpack.c.h.b16 %v546
    %v870 = vunpack.c.l.b16 %v547
    %v871 = vunpack.c.h.b16 %v547
    %v872 = vunpack.c.l.b16 %v548
    %v873 = vunpack.c.h.b16 %v548
    %v874 = vunpack.c.l.b16 %v549
    %v875 = vunpack.c.h.b16 %v549
    %v876 = vunpack.c.l.b16 %v550
    %v877 = vunpack.c.h.b16 %v550
    %v878 = vunpack.c.l.b16 %v551
    %v879 = vunpack.c.h.b16 %v551
    %v880 = vunpack.c.l.b16 %v552
    %v881 = vunpack.c.h.b16 %v552
    %v882 = vunpack.c.l.b16 %v553
    %v883 = vunpack.c.h.b16 %v553
    %v884 = vunpack.c.l.b16 %v554
    %v885 = vunpack.c.h.b16 %v554
    %v886 = vunpack.c.l.b16 %v555
    %v887 = vunpack.c.h.b16 %v555
    %v888 = vunpack.c.l.b16 %v556
    %v889 = vunpack.c.h.b16 %v556
    %v890 = vunpack.c.l.b16 %v557
    %v891 = vunpack.c.h.b16 %v557
    %v892 = vunpack.c.l.b16 %v558
    %v893 = vunpack.c.h.b16 %v558
    %v894 = vunpack.c.l.b16 %v559
    %v895 = vunpack.c.h.b16 %v559
    %v896 = vunpack.c.l.b16 %v560
    %v897 = vunpack.c.h.b16 %v560
    %v898 = vunpack.c.l.b16 %v561
    %v899 = vunpack.c.h.b16 %v561
    %v900 = vunpack.c.l.b16 %v562
    %v901 = vunpack.c.h.b16 %v562
    %v902 = vunpack.c.l.b16 %v563
    %v903 = vunpack.c.h.b16 %v563
    %v904 = vunpack.c.l.b16 %v564
    %v905 = vunpack.c.h.b16 %v564
    %v906 = vunpack.c.l.b16 %v565
    %v907 = vunpack.c.h.b16 %v565
    %v908 = vunpack.c.l.b16 %v566
    %v909 = vunpack.c.h.b16 %v566
    %v910 = vunpack.c.l.b16 %v567
    %v911 = vunpack.c.h.b16 %v567
    %v912 = vunpack.c.l.b16 %v568
    %v913 = vunpack.c.h.b16 %v568
    %v914 = vunpack.c.l.b16 %v569
    %v915 = vunpack.c.h.b16 %v569
    %v916 = vunpack.c.l.b16 %v570
    %v917 = vunpack.c.h.b16 %v570
    %v918 = vunpack.c.l.b16 %v571
    %v919 = vunpack.c.h.b16 %v571
    %v920 = vunpack.c.l.b16 %v572
    %v921 = vunpack.c.h.b16 %v572
    %v922 = vunpack.c.l.b16 %v573
    %v923 = vunpack.c.h.b16 %v573
    %v924 = vunpack.c.l.b16 %v574
    %v925 = vunpack.c.h.b16 %v574
    %v926 = vunpack.c.l.b16 %v575
    %v927 = vunpack.c.h.b16 %v575
    %v928 = vunpack.c.l.b16 %v576
    %v929 = vunpack.c.h.b16 %v576
    %v930 = vunpack.c.l.b16 %v577
    %v931 = vunpack.c.h.b16 %v577
    %v932 = vunpack.c.l.b16 %v578
    %v933 = vunpack.c.h.b16 %v578
    %v934 = vunpack.c.l.b16 %v579
    %v935 = vunpack.c.h.b16 %v579
    %v936 = vunpack.c.l.b16 %v580
    %v937 = vunpack.c.h.b16 %v580
    %v938 = vunpack.c.l.b16 %v581
    %v939 = vunpack.c.h.b16 %v581
    %v940 = vunpack.c.l.b16 %v582
    %v941 = vunpack.c.h.b16 %v582
    %v942 = vunpack.c.l.b16 %v583
    %v943 = vunpack.c.h.b16 %v583
    %v944 = vunpack.c.l.b16 %v584
    %v945 = vunpack.c.h.b16 %v584
    %v946 = vunpack.c.l.b16 %v585
    %v947 = vunpack.c.h.b16 %v585
    %v948 = vunpack.c.l.b16 %v586
    %v949 = vunpack.c.h.b16 %v586
    %v950 = vunpack.c.l.b16 %v587
    %v951 = vunpack.c.h.b16 %v587
    %v952 = vunpack.c.l.b16 %v588
    %v953 = vunpack.c.h.b16 %v588
    %v954 = vunpack.c.l.b16 %v589
    %v955 = vunpack.c.h.b16 %v589
    %v956 = vunpack.c.l.b16 %v590
    %v957 = vunpack.c.h.b16 %v590
    %v958 = vunpack.c.l.b16 %v591
    %v959 = vunpack.c.h.b16 %v591
    %v960 = vunpack.c.l.b16 %v592
    %v961 = vunpack.c.h.b16 %v592
    %v962 = vunpack.c.l.b16 %v593
    %v963 = vunpack.c.h.b16 %v593
    %v964 = vunpack.c.l.b16 %v594
    %v965 = vunpack.c.h.b16 %v594
    %v966 = vunpack.c.l.b16 %v595
    %v967 = vunpack.c.h.b16 %v595
    %v968 = vunpack.c.l.b16 %v596
    %v969 = vunpack.c.h.b16 %v596
    %v970 = vunpack.c.l.b16 %v597
    %v971 = vunpack.c.h.b16 %v597
    %v972 = vunpack.c.l.b16 %v598
    %v973 = vunpack.c.h.b16 %v598
    %v974 = vunpack.c.l.b16 %v599
    %v975 = vunpack.c.h.b16 %v599
    %v976 = vunpack.c.l.b16 %v600
    %v977 = vunpack.c.h.b16 %v600
    %v978 = vunpack.c.l.b16 %v601
    %v979 = vunpack.c.h.b16 %v601
    %v980 = vunpack.c.l.b16 %v602
    %v981 = vunpack.c.h.b16 %v602
    %v982 = vunpack.c.l.b16 %v603
    %v983 = vunpack.c.h.b16 %v603
    %v984 = vunpack.c.l.b16 %v604
    %v985 = vunpack.c.h.b16 %v604
    %v986 = vunpack.c.l.b16 %v605
    %v987 = vunpack.c.h.b16 %v605
    %v988 = vunpack.c.l.b16 %v606
    %v989 = vunpack.c.h.b16 %v606
    %v990 = vunpack.c.l.b16 %v607
    %v991 = vunpack.c.h.b16 %v607
    %v992 = vunpack.c.l.b16 %v608
    %v993 = vunpack.c.h.b16 %v608
    %v994 = vunpack.c.l.b16 %v609
    %v995 = vunpack.c.h.b16 %v609
    %v996 = vunpack.c.l.b16 %v610
    %v997 = vunpack.c.h.b16 %v610
    %v998 = vunpack.c.l.b16 %v611
    %v999 = vunpack.c.h.b16 %v611
    %v1000 = vunpack.c.l.b16 %v612
    %v1001 = vunpack.c.h.b16 %v612
    %v1002 = vunpack.c.l.b16 %v613
    %v1003 = vunpack.c.h.b16 %v613
    %v1004 = vunpack.c.l.b16 %v614
    %v1005 = vunpack.c.h.b16 %v614
    %v1006 = vunpack.c.l.b16 %v615
    %v1007 = vunpack.c.h.b16 %v615
    %v1008 = vunpack.c.l.b16 %v616
    %v1009 = vunpack.c.h.b16 %v616
    %v1010 = vunpack.c.l.b16 %v617
    %v1011 = vunpack.c.h.b16 %v617
    %v1012 = vunpack.c.l.b16 %v618
    %v1013 = vunpack.c.h.b16 %v618
    %v1014 = vunpack.c.l.b16 %v619
    %v1015 = vunpack.c.h.b16 %v619
    %v1016 = vunpack.c.l.b16 %v620
    %v1017 = vunpack.c.h.b16 %v620
    %v1018 = vunpack.c.l.b16 %v621
    %v1019 = vunpack.c.h.b16 %v621
    %v1020 = vunpack.c.l.b16 %v622
    %v1021 = vunpack.c.h.b16 %v622
    %v1022 = vunpack.c.l.b16 %v623
    %v1023 = vunpack.c.h.b16 %v623
    %v1024 = vunpack.c.l.b16 %v624
    %v1025 = vunpack.c.h.b16 %v624
    %v1026 = vunpack.c.l.b16 %v625
    %v1027 = vunpack.c.h.b16 %v625
    %v1028 = vunpack.c.l.b16 %v626
    %v1029 = vunpack.c.h.b16 %v626
    %v1030 = vunpack.c.l.b16 %v627
    %v1031 = vunpack.c.h.b16 %v627
    %v1032 = vunpack.c.l.b16 %v628
    %v1033 = vunpack.c.h.b16 %v628
    %v1034 = vunpack.c.l.b16 %v629
    %v1035 = vunpack.c.h.b16 %v629
    %v1036 = vpack.c.b16 %v784, %v780
    %v1037 = vpack.c.b16 %v785, %v781
    %v1038 = vpack.c.b16 %v786, %v782
    %v1039 = vpack.c.b16 %v787, %v783
    %v1040 = vpack.c.b16 %v792, %v788
    %v1041 = vpack.c.b16 %v793, %v789
    %v1042 = vpack.c.b16 %v794, %v790
    %v1043 = vpack.c.b16 %v795, %v791
    %v1044 = vpack.c.b16 %v800, %v796
    %v1045 = vpack.c.b16 %v801, %v797
    %v1046 = vpack.c.b16 %v802, %v798
    %v1047 = vpack.c.b16 %v803, %v799
    %v1048 = vpack.c.b16 %v808, %v804
    %v1049 = vpack.c.b16 %v809, %v805
    %v1050 = vpack.c.b16 %v810, %v806
    %v1051 = vpack.c.b16 %v811, %v807
    %v1052 = vpack.c.b16 %v816, %v812
    %v1053 = vpack.c.b16 %v817, %v813
    %v1054 = vpack.c.b16 %v818, %v814
    %v1055 = vpack.c.b16 %v819, %v815
    %v1056 = vpack.c.b16 %v824, %v820
    %v1057 = vpack.c.b16 %v825, %v821
    %v1058 = vpack.c.b16 %v826, %v822
    %v1059 = vpack.c.b16 %v827, %v823
    %v1060 = vpack.c.b16 %v832, %v828
    %v1061 = vpack.c.b16 %v833, %v829
    %v1062 = vpack.c.b16 %v834, %v830
    %v1063 = vpack.c.b16 %v835, %v831
    %v1064 = vpack.c.b16 %v840, %v836
    %v1065 = vpack.c.b16 %v841, %v837
    %v1066 = vpack.c.b16 %v842, %v838
    %v1067 = vpack.c.b16 %v843, %v839
    %v1068 = vpack.c.b16 %v848, %v844
    %v1069 = vpack.c.b16 %v849, %v845
    %v1070 = vpack.c.b16 %v850, %v846
    %v1071 = vpack.c.b16 %v851, %v847
    %v1072 = vpack.c.b16 %v856, %v852
    %v1073 = vpack.c.b16 %v857, %v853
    %v1074 = vpack.c.b16 %v858, %v854
    %v1075 = vpack.c.b16 %v859, %v855
    %v1076 = vpack.c.b16 %v864, %v860
    %v1077 = vpack.c.b16 %v865, %v861
    %v1078 = vpack.c.b16 %v866, %v862
    %v1079 = vpack.c.b16 %v867, %v863
    %v1080 = vpack.c.b16 %v872, %v868
    %v1081 = vpack.c.b16 %v873, %v869
    %v1082 = vpack.c.b16 %v874, %v870
    %v1083 = vpack.c.b16 %v875, %v871
    %v1084 = vpack.c.b16 %v880, %v876
    %v1085 = vpack.c.b16 %v881, %v877
    %v1086 = vpack.c.b16 %v882, %v878
    %v1087 = vpack.c.b16 %v883, %v879
    %v1088 = vpack.c.b16 %v888, %v884
    %v1089 = vpack.c.b16 %v889, %v885
    %v1090 = vpack.c.b16 %v890, %v886
    %v1091 = vpack.c.b16 %v891, %v887
    %v1092 = vpack.c.b16 %v896, %v892
    %v1093 = vpack.c.b16 %v897, %v893
    %v1094 = vpack.c.b16 %v898, %v894
    %v1095 = vpack.c.b16 %v899, %v895
    %v1096 = vpack.c.b16 %v904, %v900
    %v1097 = vpack.c.b16 %v905, %v901
    %v1098 = vpack.c.b16 %v906, %v902
    %v1099 = vpack.c.b16 %v907, %v903
    %v1100 = vpack.c.b16 %v912, %v908
    %v1101 = vpack.c.b16 %v913, %v909
    %v1102 = vpack.c.b16 %v914, %v910
    %v1103 = vpack.c.b16 %v915, %v911
    %v1104 = vpack.c.b16 %v920, %v916
    %v1105 = vpack.c.b16 %v921, %v917
    %v1106 = vpack.c.b16 %v922, %v918
    %v1107 = vpack.c.b16 %v923, %v919
    %v1108 = vpack.c.b16 %v928, %v924
    %v1109 = vpack.c.b16 %v929, %v925
    %v1110 = vpack.c.b16 %v930, %v926
    %v1111 = vpack.c.b16 %v931, %v927
    %v1112 = vpack.c.b16 %v936, %v932
    %v1113 = vpack.c.b16 %v937, %v933
    %v1114 = vpack.c.b16 %v938, %v934
    %v1115 = vpack.c.b16 %v939, %v935
    %v1116 = vpack.c.b16 %v944, %v940
    %v1117 = vpack.c.b16 %v945, %v941
    %v1118 = vpack.c.b16 %v946, %v942
    %v1119 = vpack.c.b16 %v947, %v943
    %v1120 = vpack.c.b16 %v952, %v948
    %v1121 = vpack.c.b16 %v953, %v949
    %v1122 = vpack.c.b16 %v954, %v950
    %v1123 = vpack.c.b16 %v955, %v951
    %v1124 = vpack.c.b16 %v960, %v956
    %v1125 = vpack.c.b16 %v961, %v957
    %v1126 = vpack.c.b16 %v962, %v958
    %v1127 = vpack.c.b16 %v963, %v959
    %v1128 = vpack.c.b16 %v968, %v964
    %v1129 = vpack.c.b16 %v969, %v965
    %v1130 = vpack.c.b16 %v970, %v966
    %v1131 = vpack.c.b16 %v971, %v967
    %v1132 = vpack.c.b16 %v976, %v972
    %v1133 = vpack.c.b16 %v977, %v973
    %v1134 = vpack.c.b16 %v978, %v974
    %v1135 = vpack.c.b16 %v979, %v975
    %v1136 = vpack.c.b16 %v984, %v980
    %v1137 = vpack.c.b16 %v985, %v981
    %v1138 = vpack.c.b16 %v986, %v982
    %v1139 = vpack.c.b16 %v987, %v983
    %v1140 = vpack.c.b16 %v992, %v988
    %v1141 = vpack.c.b16 %v993, %v989
    %v1142 = vpack.c.b16 %v994, %v990
    %v1143 = vpack.c.b16 %v995, %v991
    %v1144 = vpack.c.b16 %v1000, %v996
    %v1145 = vpack.c.b16 %v1001, %v997
    %v1146 = vpack.c.b16 %v1002, %v998
    %v1147 = vpack.c.b16 %v1003, %v999
    %v1148 = vpack.c.b16 %v1008, %v1004
    %v1149 = vpack.c.b16 %v1009, %v1005
    %v1150 = vpack.c.b16 %v1010, %v1006
    %v1151 = vpack.c.b16 %v1011, %v1007
    %v1152 = vpack.c.b16 %v1016, %v1012
    %v1153 = vpack.c.b16 %v1017, %v1013
    %v1154 = vpack.c.b16 %v1018, %v1014
    %v1155 = vpack.c.b16 %v1019, %v1015
    %v1156 = vpack.c.b16 %v1024, %v1020
    %v1157 = vpack.c.b16 %v1025, %v1021
    %v1158 = vpack.c.b16 %v1026, %v1022
    %v1159 = vpack.c.b16 %v1027, %v1023
    %v1160 = vpack.c.b16 %v1032, %v1028
    %v1161 = vpack.c.b16 %v1033, %v1029
    %v1162 = vpack.c.b16 %v1034, %v1030
    %v1163 = vpack.c.b16 %v1035, %v1031
    %1292 = vmatprep.subr.bf16.mxu0 %v1037
    %1293 = vmatpush1.bf16.msra.mxu0 %v1036
    %1294 = vmatprep.subr.bf16.mxu0 %v1041
    %1295 = vmatpush1.bf16.msra.mxu0 %v1040
    %1296 = vmatprep.subr.bf16.mxu0 %v1045
    %1297 = vmatpush1.bf16.msra.mxu0 %v1044
    %1298 = vmatprep.subr.bf16.mxu0 %v1049
    %1299 = vmatpush1.bf16.msra.mxu0 %v1048
    %1300 = vmatprep.subr.bf16.mxu0 %v1053
    %1301 = vmatpush1.bf16.msra.mxu0 %v1052
    %1302 = vmatprep.subr.bf16.mxu0 %v1057
    %1303 = vmatpush1.bf16.msra.mxu0 %v1056
    %1304 = vmatprep.subr.bf16.mxu0 %v1061
    %1305 = vmatpush1.bf16.msra.mxu0 %v1060
    %1306 = vmatprep.subr.bf16.mxu0 %v1065
    %1307 = vmatpush1.bf16.msra.mxu0 %v1064
    %1308 = vmatprep.subr.bf16.mxu0 %v1069
    %1309 = vmatpush1.bf16.msra.mxu0 %v1068
    %1310 = vmatprep.subr.bf16.mxu0 %v1073
    %1311 = vmatpush1.bf16.msra.mxu0 %v1072
    %1312 = vmatprep.subr.bf16.mxu0 %v1077
    %1313 = vmatpush1.bf16.msra.mxu0 %v1076
    %1314 = vmatprep.subr.bf16.mxu0 %v1081
    %1315 = vmatpush1.bf16.msra.mxu0 %v1080
    %1316 = vmatprep.subr.bf16.mxu0 %v1085
    %1317 = vmatpush1.bf16.msra.mxu0 %v1084
    %1318 = vmatprep.subr.bf16.mxu0 %v1089
    %1319 = vmatpush1.bf16.msra.mxu0 %v1088
    %1320 = vmatprep.subr.bf16.mxu0 %v1093
    %1321 = vmatpush1.bf16.msra.mxu0 %v1092
    %1322 = vmatprep.subr.bf16.mxu0 %v1097
    %1323 = vmatpush1.bf16.msra.mxu0 %v1096
    %1324 = vmatprep.mubr.bf16.mxu0 %v495
    %1325 = vmatmul.mubr.bf16.gmra.mrb[0].mxu0 %v494
    %v1326 = vpop.f32.mrb[0].mxu0
    %v1327 = vadd.f32 %v635, %v1326
    %v1328 = vpop.f32.mrb[0].mxu0
    %v1329 = vadd.f32 %v639, %v1328
    %v1330 = vpop.f32.mrb[0].mxu0
    %v1331 = vadd.f32 %v635, %v1330
    %v1332 = vpop.f32.mrb[0].mxu0
    %v1333 = vadd.f32 %v639, %v1332
    %1334 = vdwg.mxu0
    %1335 = vmatprep.subr.bf16.mxu0 %v1101
    %1336 = vmatpush1.bf16.msra.mxu0 %v1100
    %1337 = vmatprep.subr.bf16.mxu0 %v1105
    %1338 = vmatpush1.bf16.msra.mxu0 %v1104
    %1339 = vmatprep.subr.bf16.mxu0 %v1109
    %1340 = vmatpush1.bf16.msra.mxu0 %v1108
    %1341 = vmatprep.subr.bf16.mxu0 %v1113
    %1342 = vmatpush1.bf16.msra.mxu0 %v1112
    %1343 = vmatprep.subr.bf16.mxu0 %v1117
    %1344 = vmatpush1.bf16.msra.mxu0 %v1116
    %1345 = vmatprep.subr.bf16.mxu0 %v1121
    %1346 = vmatpush1.bf16.msra.mxu0 %v1120
    %1347 = vmatprep.subr.bf16.mxu0 %v1125
    %1348 = vmatpush1.bf16.msra.mxu0 %v1124
    %1349 = vmatprep.subr.bf16.mxu0 %v1129
    %1350 = vmatpush1.bf16.msra.mxu0 %v1128
    %1351 = vmatprep.subr.bf16.mxu0 %v1133
    %1352 = vmatpush1.bf16.msra.mxu0 %v1132
    %1353 = vmatprep.subr.bf16.mxu0 %v1137
    %1354 = vmatpush1.bf16.msra.mxu0 %v1136
    %1355 = vmatprep.subr.bf16.mxu0 %v1141
    %1356 = vmatpush1.bf16.msra.mxu0 %v1140
    %1357 = vmatprep.subr.bf16.mxu0 %v1145
    %1358 = vmatpush1.bf16.msra.mxu0 %v1144
    %1359 = vmatprep.subr.bf16.mxu0 %v1149
    %1360 = vmatpush1.bf16.msra.mxu0 %v1148
    %1361 = vmatprep.subr.bf16.mxu0 %v1153
    %1362 = vmatpush1.bf16.msra.mxu0 %v1152
    %1363 = vmatprep.subr.bf16.mxu0 %v1157
    %1364 = vmatpush1.bf16.msra.mxu0 %v1156
    %1365 = vmatprep.subr.bf16.mxu0 %v1161
    %1366 = vmatpush1.bf16.msra.mxu0 %v1160
    %1367 = vmatprep.mubr.bf16.mxu0 %v497
    %1368 = vmatmul.mubr.bf16.gmra.mrb[0].mxu0 %v496
    %v1369 = vpop.f32.mrb[0].mxu0
    %v1370 = vadd.f32 %v1327, %v1369
    %v1371 = vpop.f32.mrb[0].mxu0
    %v1372 = vadd.f32 %v1329, %v1371
    %v1373 = vpop.f32.mrb[0].mxu0
    %v1374 = vadd.f32 %v1331, %v1373
    %v1375 = vpop.f32.mrb[0].mxu0
    %v1376 = vadd.f32 %v1333, %v1375
    %1377 = vdwg.mxu0
    %1378 = vmatprep.subr.bf16.mxu0 %v1039
    %1379 = vmatpush1.bf16.msra.mxu0 %v1038
    %1380 = vmatprep.subr.bf16.mxu0 %v1043
    %1381 = vmatpush1.bf16.msra.mxu0 %v1042
    %1382 = vmatprep.subr.bf16.mxu0 %v1047
    %1383 = vmatpush1.bf16.msra.mxu0 %v1046
    %1384 = vmatprep.subr.bf16.mxu0 %v1051
    %1385 = vmatpush1.bf16.msra.mxu0 %v1050
    %1386 = vmatprep.subr.bf16.mxu0 %v1055
    %1387 = vmatpush1.bf16.msra.mxu0 %v1054
    %1388 = vmatprep.subr.bf16.mxu0 %v1059
    %1389 = vmatpush1.bf16.msra.mxu0 %v1058
    %1390 = vmatprep.subr.bf16.mxu0 %v1063
    %1391 = vmatpush1.bf16.msra.mxu0 %v1062
    %1392 = vmatprep.subr.bf16.mxu0 %v1067
    %1393 = vmatpush1.bf16.msra.mxu0 %v1066
    %1394 = vmatprep.subr.bf16.mxu0 %v1071
    %1395 = vmatpush1.bf16.msra.mxu0 %v1070
    %1396 = vmatprep.subr.bf16.mxu0 %v1075
    %1397 = vmatpush1.bf16.msra.mxu0 %v1074
    %1398 = vmatprep.subr.bf16.mxu0 %v1079
    %1399 = vmatpush1.bf16.msra.mxu0 %v1078
    %1400 = vmatprep.subr.bf16.mxu0 %v1083
    %1401 = vmatpush1.bf16.msra.mxu0 %v1082
    %1402 = vmatprep.subr.bf16.mxu0 %v1087
    %1403 = vmatpush1.bf16.msra.mxu0 %v1086
    %1404 = vmatprep.subr.bf16.mxu0 %v1091
    %1405 = vmatpush1.bf16.msra.mxu0 %v1090
    %1406 = vmatprep.subr.bf16.mxu0 %v1095
    %1407 = vmatpush1.bf16.msra.mxu0 %v1094
    %1408 = vmatprep.subr.bf16.mxu0 %v1099
    %1409 = vmatpush1.bf16.msra.mxu0 %v1098
    %1410 = vmatprep.mubr.bf16.mxu0 %v495
    %1411 = vmatmul.mubr.bf16.gmra.mrb[0].mxu0 %v494
    %v1412 = vpop.f32.mrb[0].mxu0
    %v1413 = vadd.f32 %v643, %v1412
    %v1414 = vpop.f32.mrb[0].mxu0
    %v1415 = vadd.f32 %v647, %v1414
    %v1416 = vpop.f32.mrb[0].mxu0
    %v1417 = vadd.f32 %v643, %v1416
    %v1418 = vpop.f32.mrb[0].mxu0
    %v1419 = vadd.f32 %v647, %v1418
    %1420 = vdwg.mxu0
    %1421 = vmatprep.subr.bf16.mxu0 %v1103
    %1422 = vmatpush1.bf16.msra.mxu0 %v1102
    %1423 = vmatprep.subr.bf16.mxu0 %v1107
    %1424 = vmatpush1.bf16.msra.mxu0 %v1106
    %1425 = vmatprep.subr.bf16.mxu0 %v1111
    %1426 = vmatpush1.bf16.msra.mxu0 %v1110
    %1427 = vmatprep.subr.bf16.mxu0 %v1115
    %1428 = vmatpush1.bf16.msra.mxu0 %v1114
    %1429 = vmatprep.subr.bf16.mxu0 %v1119
    %1430 = vmatpush1.bf16.msra.mxu0 %v1118
    %1431 = vmatprep.subr.bf16.mxu0 %v1123
    %1432 = vmatpush1.bf16.msra.mxu0 %v1122
    %1433 = vmatprep.subr.bf16.mxu0 %v1127
    %1434 = vmatpush1.bf16.msra.mxu0 %v1126
    %1435 = vmatprep.subr.bf16.mxu0 %v1131
    %1436 = vmatpush1.bf16.msra.mxu0 %v1130
    %1437 = vmatprep.subr.bf16.mxu0 %v1135
    %1438 = vmatpush1.bf16.msra.mxu0 %v1134
    %1439 = vmatprep.subr.bf16.mxu0 %v1139
    %1440 = vmatpush1.bf16.msra.mxu0 %v1138
    %1441 = vmatprep.subr.bf16.mxu0 %v1143
    %1442 = vmatpush1.bf16.msra.mxu0 %v1142
    %1443 = vmatprep.subr.bf16.mxu0 %v1147
    %1444 = vmatpush1.bf16.msra.mxu0 %v1146
    %1445 = vmatprep.subr.bf16.mxu0 %v1151
    %1446 = vmatpush1.bf16.msra.mxu0 %v1150
    %1447 = vmatprep.subr.bf16.mxu0 %v1155
    %1448 = vmatpush1.bf16.msra.mxu0 %v1154
    %1449 = vmatprep.subr.bf16.mxu0 %v1159
    %1450 = vmatpush1.bf16.msra.mxu0 %v1158
    %1451 = vmatprep.subr.bf16.mxu0 %v1163
    %1452 = vmatpush1.bf16.msra.mxu0 %v1162
    %1453 = vmatprep.mubr.bf16.mxu0 %v497
    %1454 = vmatmul.mubr.bf16.gmra.mrb[0].mxu0 %v496
    %v1455 = vpop.f32.mrb[0].mxu0
    %v1456 = vadd.f32 %v1413, %v1455
    %v1457 = vpop.f32.mrb[0].mxu0
    %v1458 = vadd.f32 %v1415, %v1457
    %v1459 = vpop.f32.mrb[0].mxu0
    %v1460 = vadd.f32 %v1417, %v1459
    %v1461 = vpop.f32.mrb[0].mxu0
    %v1462 = vadd.f32 %v1419, %v1461
    %1463 = vdwg.mxu0
    %v1464 = vpack.c.bf16 %v1374, %v1370
    %v1465 = vpack.c.bf16 %v1376, %v1372
    %v1466 = vpack.c.bf16 %v1460, %v1456
    %v1467 = vpack.c.bf16 %v1462, %v1458
    %v1468 = vtanh.bf16.pop %v1464
    %v1469 = vtanh.bf16.pop %v1465
    %v1470 = vtanh.bf16.pop %v1466
    %v1471 = vtanh.bf16.pop %v1467
    %v1472 = vld [vmem:[#allocation11] sm:$0xff]
    %v1473 = vld [vmem:[#allocation11 + $0x8] sm:$0xff]
    %v1474 = vld [vmem:[#allocation11 + $0x10] sm:$0xff]
    %v1475 = vld [vmem:[#allocation11 + $0x18] sm:$0xff]
    %v1476 = vld [vmem:[#allocation11 + $0x20] sm:$0xff]
    %v1477 = vld [vmem:[#allocation11 + $0x28] sm:$0xff]
    %v1478 = vld [vmem:[#allocation11 + $0x30] sm:$0xff]
    %v1479 = vld [vmem:[#allocation11 + $0x38] sm:$0xff]
    %v1480 = vld [vmem:[#allocation11 + $0x40] sm:$0xff]
    %v1481 = vld [vmem:[#allocation11 + $0x48] sm:$0xff]
    %v1482 = vld [vmem:[#allocation11 + $0x50] sm:$0xff]
    %v1483 = vld [vmem:[#allocation11 + $0x58] sm:$0xff]
    %v1484 = vld [vmem:[#allocation11 + $0x60] sm:$0xff]
    %v1485 = vld [vmem:[#allocation11 + $0x68] sm:$0xff]
    %v1486 = vld [vmem:[#allocation11 + $0x70] sm:$0xff]
    %v1487 = vld [vmem:[#allocation11 + $0x78] sm:$0xff]
    %v1488 = vld [vmem:[#allocation11 + $0x80] sm:$0xff]
    %v1489 = vld [vmem:[#allocation11 + $0x88] sm:$0xff]
    %v1490 = vld [vmem:[#allocation11 + $0x90] sm:$0xff]
    %v1491 = vld [vmem:[#allocation11 + $0x98] sm:$0xff]
    %v1492 = vld [vmem:[#allocation11 + $0xa0] sm:$0xff]
    %v1493 = vld [vmem:[#allocation11 + $0xa8] sm:$0xff]
    %v1494 = vld [vmem:[#allocation11 + $0xb0] sm:$0xff]
    %v1495 = vld [vmem:[#allocation11 + $0xb8] sm:$0xff]
    %v1496 = vld [vmem:[#allocation11 + $0xc0] sm:$0xff]
    %v1497 = vld [vmem:[#allocation11 + $0xc8] sm:$0xff]
    %v1498 = vld [vmem:[#allocation11 + $0xd0] sm:$0xff]
    %v1499 = vld [vmem:[#allocation11 + $0xd8] sm:$0xff]
    %v1500 = vld [vmem:[#allocation11 + $0xe0] sm:$0xff]
    %v1501 = vld [vmem:[#allocation11 + $0xe8] sm:$0xff]
    %v1502 = vld [vmem:[#allocation11 + $0xf0] sm:$0xff]
    %v1503 = vld [vmem:[#allocation11 + $0xf8] sm:$0xff]
    %v1504 = vld [vmem:[#allocation11 + $0x100] sm:$0xff]
    %v1505 = vld [vmem:[#allocation11 + $0x108] sm:$0xff]
    %v1506 = vld [vmem:[#allocation11 + $0x110] sm:$0xff]
    %v1507 = vld [vmem:[#allocation11 + $0x118] sm:$0xff]
    %v1508 = vld [vmem:[#allocation11 + $0x120] sm:$0xff]
    %v1509 = vld [vmem:[#allocation11 + $0x128] sm:$0xff]
    %v1510 = vld [vmem:[#allocation11 + $0x130] sm:$0xff]
    %v1511 = vld [vmem:[#allocation11 + $0x138] sm:$0xff]
    %v1512 = vld [vmem:[#allocation11 + $0x140] sm:$0xff]
    %v1513 = vld [vmem:[#allocation11 + $0x148] sm:$0xff]
    %v1514 = vld [vmem:[#allocation11 + $0x150] sm:$0xff]
    %v1515 = vld [vmem:[#allocation11 + $0x158] sm:$0xff]
    %v1516 = vld [vmem:[#allocation11 + $0x160] sm:$0xff]
    %v1517 = vld [vmem:[#allocation11 + $0x168] sm:$0xff]
    %v1518 = vld [vmem:[#allocation11 + $0x170] sm:$0xff]
    %v1519 = vld [vmem:[#allocation11 + $0x178] sm:$0xff]
    %v1520 = vld [vmem:[#allocation11 + $0x180] sm:$0xff]
    %v1521 = vld [vmem:[#allocation11 + $0x188] sm:$0xff]
    %v1522 = vld [vmem:[#allocation11 + $0x190] sm:$0xff]
    %v1523 = vld [vmem:[#allocation11 + $0x198] sm:$0xff]
    %v1524 = vld [vmem:[#allocation11 + $0x1a0] sm:$0xff]
    %v1525 = vld [vmem:[#allocation11 + $0x1a8] sm:$0xff]
    %v1526 = vld [vmem:[#allocation11 + $0x1b0] sm:$0xff]
    %v1527 = vld [vmem:[#allocation11 + $0x1b8] sm:$0xff]
    %v1528 = vld [vmem:[#allocation11 + $0x1c0] sm:$0xff]
    %v1529 = vld [vmem:[#allocation11 + $0x1c8] sm:$0xff]
    %v1530 = vld [vmem:[#allocation11 + $0x1d0] sm:$0xff]
    %v1531 = vld [vmem:[#allocation11 + $0x1d8] sm:$0xff]
    %v1532 = vld [vmem:[#allocation11 + $0x1e0] sm:$0xff]
    %v1533 = vld [vmem:[#allocation11 + $0x1e8] sm:$0xff]
    %v1534 = vld [vmem:[#allocation11 + $0x1f0] sm:$0xff]
    %v1535 = vld [vmem:[#allocation11 + $0x1f8] sm:$0xff]
    %v1536 = vld [vmem:[#allocation11 + $0x200] sm:$0xff]
    %v1537 = vld [vmem:[#allocation11 + $0x208] sm:$0xff]
    %v1538 = vld [vmem:[#allocation11 + $0x210] sm:$0xff]
    %v1539 = vld [vmem:[#allocation11 + $0x218] sm:$0xff]
    %v1540 = vld [vmem:[#allocation11 + $0x220] sm:$0xff]
    %v1541 = vld [vmem:[#allocation11 + $0x228] sm:$0xff]
    %v1542 = vld [vmem:[#allocation11 + $0x230] sm:$0xff]
    %v1543 = vld [vmem:[#allocation11 + $0x238] sm:$0xff]
    %v1544 = vld [vmem:[#allocation11 + $0x240] sm:$0xff]
    %v1545 = vld [vmem:[#allocation11 + $0x248] sm:$0xff]
    %v1546 = vld [vmem:[#allocation11 + $0x250] sm:$0xff]
    %v1547 = vld [vmem:[#allocation11 + $0x258] sm:$0xff]
    %v1548 = vld [vmem:[#allocation11 + $0x260] sm:$0xff]
    %v1549 = vld [vmem:[#allocation11 + $0x268] sm:$0xff]
    %v1550 = vld [vmem:[#allocation11 + $0x270] sm:$0xff]
    %v1551 = vld [vmem:[#allocation11 + $0x278] sm:$0xff]
    %v1552 = vld [vmem:[#allocation11 + $0x280] sm:$0xff]
    %v1553 = vld [vmem:[#allocation11 + $0x288] sm:$0xff]
    %v1554 = vld [vmem:[#allocation11 + $0x290] sm:$0xff]
    %v1555 = vld [vmem:[#allocation11 + $0x298] sm:$0xff]
    %v1556 = vld [vmem:[#allocation11 + $0x2a0] sm:$0xff]
    %v1557 = vld [vmem:[#allocation11 + $0x2a8] sm:$0xff]
    %v1558 = vld [vmem:[#allocation11 + $0x2b0] sm:$0xff]
    %v1559 = vld [vmem:[#allocation11 + $0x2b8] sm:$0xff]
    %v1560 = vld [vmem:[#allocation11 + $0x2c0] sm:$0xff]
    %v1561 = vld [vmem:[#allocation11 + $0x2c8] sm:$0xff]
    %v1562 = vld [vmem:[#allocation11 + $0x2d0] sm:$0xff]
    %v1563 = vld [vmem:[#allocation11 + $0x2d8] sm:$0xff]
    %v1564 = vld [vmem:[#allocation11 + $0x2e0] sm:$0xff]
    %v1565 = vld [vmem:[#allocation11 + $0x2e8] sm:$0xff]
    %v1566 = vld [vmem:[#allocation11 + $0x2f0] sm:$0xff]
    %v1567 = vld [vmem:[#allocation11 + $0x2f8] sm:$0xff]
    %v1568 = vld [vmem:[#allocation11 + $0x300] sm:$0xff]
    %v1569 = vld [vmem:[#allocation11 + $0x308] sm:$0xff]
    %v1570 = vld [vmem:[#allocation11 + $0x310] sm:$0xff]
    %v1571 = vld [vmem:[#allocation11 + $0x318] sm:$0xff]
    %v1572 = vld [vmem:[#allocation11 + $0x320] sm:$0xff]
    %v1573 = vld [vmem:[#allocation11 + $0x328] sm:$0xff]
    %v1574 = vld [vmem:[#allocation11 + $0x330] sm:$0xff]
    %v1575 = vld [vmem:[#allocation11 + $0x338] sm:$0xff]
    %v1576 = vld [vmem:[#allocation11 + $0x340] sm:$0xff]
    %v1577 = vld [vmem:[#allocation11 + $0x348] sm:$0xff]
    %v1578 = vld [vmem:[#allocation11 + $0x350] sm:$0xff]
    %v1579 = vld [vmem:[#allocation11 + $0x358] sm:$0xff]
    %v1580 = vld [vmem:[#allocation11 + $0x360] sm:$0xff]
    %v1581 = vld [vmem:[#allocation11 + $0x368] sm:$0xff]
    %v1582 = vld [vmem:[#allocation11 + $0x370] sm:$0xff]
    %v1583 = vld [vmem:[#allocation11 + $0x378] sm:$0xff]
    %v1584 = vld [vmem:[#allocation11 + $0x380] sm:$0xff]
    %v1585 = vld [vmem:[#allocation11 + $0x388] sm:$0xff]
    %v1586 = vld [vmem:[#allocation11 + $0x390] sm:$0xff]
    %v1587 = vld [vmem:[#allocation11 + $0x398] sm:$0xff]
    %v1588 = vld [vmem:[#allocation11 + $0x3a0] sm:$0xff]
    %v1589 = vld [vmem:[#allocation11 + $0x3a8] sm:$0xff]
    %v1590 = vld [vmem:[#allocation11 + $0x3b0] sm:$0xff]
    %v1591 = vld [vmem:[#allocation11 + $0x3b8] sm:$0xff]
    %v1592 = vld [vmem:[#allocation11 + $0x3c0] sm:$0xff]
    %v1593 = vld [vmem:[#allocation11 + $0x3c8] sm:$0xff]
    %v1594 = vld [vmem:[#allocation11 + $0x3d0] sm:$0xff]
    %v1595 = vld [vmem:[#allocation11 + $0x3d8] sm:$0xff]
    %v1596 = vld [vmem:[#allocation11 + $0x3e0] sm:$0xff]
    %v1597 = vld [vmem:[#allocation11 + $0x3e8] sm:$0xff]
    %v1598 = vld [vmem:[#allocation11 + $0x3f0] sm:$0xff]
    %v1599 = vld [vmem:[#allocation11 + $0x3f8] sm:$0xff]
    %v1600 = vld [vmem:[#allocation13] sm:$0xf]
    %v1602 = vlaneseq
    %v1603 = vshrl.u32 %v1602, 7
    %v1604 = vsub.s32 0, %v1603
    %v1605 = vrot.slane %v1600, %v1604
    %v1606 = vlaneseq
    %v1607 = vshrl.u32 %v1606, 7
    %v1608 = vsub.s32 1, %v1607
    %v1609 = vrot.slane %v1600, %v1608
    %v1610 = vlaneseq
    %v1611 = vshrl.u32 %v1610, 7
    %v1612 = vsub.s32 2, %v1611
    %v1613 = vrot.slane %v1600, %v1612
    %v1614 = vlaneseq
    %v1615 = vshrl.u32 %v1614, 7
    %v1616 = vsub.s32 3, %v1615
    %v1617 = vrot.slane %v1600, %v1616
    %v1750 = vunpack.c.l.b16 %v1472
    %v1751 = vunpack.c.h.b16 %v1472
    %v1752 = vunpack.c.l.b16 %v1473
    %v1753 = vunpack.c.h.b16 %v1473
    %v1754 = vunpack.c.l.b16 %v1474
    %v1755 = vunpack.c.h.b16 %v1474
    %v1756 = vunpack.c.l.b16 %v1475
    %v1757 = vunpack.c.h.b16 %v1475
    %v1758 = vunpack.c.l.b16 %v1476
    %v1759 = vunpack.c.h.b16 %v1476
    %v1760 = vunpack.c.l.b16 %v1477
    %v1761 = vunpack.c.h.b16 %v1477
    %v1762 = vunpack.c.l.b16 %v1478
    %v1763 = vunpack.c.h.b16 %v1478
    %v1764 = vunpack.c.l.b16 %v1479
    %v1765 = vunpack.c.h.b16 %v1479
    %v1766 = vunpack.c.l.b16 %v1480
    %v1767 = vunpack.c.h.b16 %v1480
    %v1768 = vunpack.c.l.b16 %v1481
    %v1769 = vunpack.c.h.b16 %v1481
    %v1770 = vunpack.c.l.b16 %v1482
    %v1771 = vunpack.c.h.b16 %v1482
    %v1772 = vunpack.c.l.b16 %v1483
    %v1773 = vunpack.c.h.b16 %v1483
    %v1774 = vunpack.c.l.b16 %v1484
    %v1775 = vunpack.c.h.b16 %v1484
    %v1776 = vunpack.c.l.b16 %v1485
    %v1777 = vunpack.c.h.b16 %v1485
    %v1778 = vunpack.c.l.b16 %v1486
    %v1779 = vunpack.c.h.b16 %v1486
    %v1780 = vunpack.c.l.b16 %v1487
    %v1781 = vunpack.c.h.b16 %v1487
    %v1782 = vunpack.c.l.b16 %v1488
    %v1783 = vunpack.c.h.b16 %v1488
    %v1784 = vunpack.c.l.b16 %v1489
    %v1785 = vunpack.c.h.b16 %v1489
    %v1786 = vunpack.c.l.b16 %v1490
    %v1787 = vunpack.c.h.b16 %v1490
    %v1788 = vunpack.c.l.b16 %v1491
    %v1789 = vunpack.c.h.b16 %v1491
    %v1790 = vunpack.c.l.b16 %v1492
    %v1791 = vunpack.c.h.b16 %v1492
    %v1792 = vunpack.c.l.b16 %v1493
    %v1793 = vunpack.c.h.b16 %v1493
    %v1794 = vunpack.c.l.b16 %v1494
    %v1795 = vunpack.c.h.b16 %v1494
    %v1796 = vunpack.c.l.b16 %v1495
    %v1797 = vunpack.c.h.b16 %v1495
    %v1798 = vunpack.c.l.b16 %v1496
    %v1799 = vunpack.c.h.b16 %v1496
    %v1800 = vunpack.c.l.b16 %v1497
    %v1801 = vunpack.c.h.b16 %v1497
    %v1802 = vunpack.c.l.b16 %v1498
    %v1803 = vunpack.c.h.b16 %v1498
    %v1804 = vunpack.c.l.b16 %v1499
    %v1805 = vunpack.c.h.b16 %v1499
    %v1806 = vunpack.c.l.b16 %v1500
    %v1807 = vunpack.c.h.b16 %v1500
    %v1808 = vunpack.c.l.b16 %v1501
    %v1809 = vunpack.c.h.b16 %v1501
    %v1810 = vunpack.c.l.b16 %v1502
    %v1811 = vunpack.c.h.b16 %v1502
    %v1812 = vunpack.c.l.b16 %v1503
    %v1813 = vunpack.c.h.b16 %v1503
    %v1814 = vunpack.c.l.b16 %v1504
    %v1815 = vunpack.c.h.b16 %v1504
    %v1816 = vunpack.c.l.b16 %v1505
    %v1817 = vunpack.c.h.b16 %v1505
    %v1818 = vunpack.c.l.b16 %v1506
    %v1819 = vunpack.c.h.b16 %v1506
    %v1820 = vunpack.c.l.b16 %v1507
    %v1821 = vunpack.c.h.b16 %v1507
    %v1822 = vunpack.c.l.b16 %v1508
    %v1823 = vunpack.c.h.b16 %v1508
    %v1824 = vunpack.c.l.b16 %v1509
    %v1825 = vunpack.c.h.b16 %v1509
    %v1826 = vunpack.c.l.b16 %v1510
    %v1827 = vunpack.c.h.b16 %v1510
    %v1828 = vunpack.c.l.b16 %v1511
    %v1829 = vunpack.c.h.b16 %v1511
    %v1830 = vunpack.c.l.b16 %v1512
    %v1831 = vunpack.c.h.b16 %v1512
    %v1832 = vunpack.c.l.b16 %v1513
    %v1833 = vunpack.c.h.b16 %v1513
    %v1834 = vunpack.c.l.b16 %v1514
    %v1835 = vunpack.c.h.b16 %v1514
    %v1836 = vunpack.c.l.b16 %v1515
    %v1837 = vunpack.c.h.b16 %v1515
    %v1838 = vunpack.c.l.b16 %v1516
    %v1839 = vunpack.c.h.b16 %v1516
    %v1840 = vunpack.c.l.b16 %v1517
    %v1841 = vunpack.c.h.b16 %v1517
    %v1842 = vunpack.c.l.b16 %v1518
    %v1843 = vunpack.c.h.b16 %v1518
    %v1844 = vunpack.c.l.b16 %v1519
    %v1845 = vunpack.c.h.b16 %v1519
    %v1846 = vunpack.c.l.b16 %v1520
    %v1847 = vunpack.c.h.b16 %v1520
    %v1848 = vunpack.c.l.b16 %v1521
    %v1849 = vunpack.c.h.b16 %v1521
    %v1850 = vunpack.c.l.b16 %v1522
    %v1851 = vunpack.c.h.b16 %v1522
    %v1852 = vunpack.c.l.b16 %v1523
    %v1853 = vunpack.c.h.b16 %v1523
    %v1854 = vunpack.c.l.b16 %v1524
    %v1855 = vunpack.c.h.b16 %v1524
    %v1856 = vunpack.c.l.b16 %v1525
    %v1857 = vunpack.c.h.b16 %v1525
    %v1858 = vunpack.c.l.b16 %v1526
    %v1859 = vunpack.c.h.b16 %v1526
    %v1860 = vunpack.c.l.b16 %v1527
    %v1861 = vunpack.c.h.b16 %v1527
    %v1862 = vunpack.c.l.b16 %v1528
    %v1863 = vunpack.c.h.b16 %v1528
    %v1864 = vunpack.c.l.b16 %v1529
    %v1865 = vunpack.c.h.b16 %v1529
    %v1866 = vunpack.c.l.b16 %v1530
    %v1867 = vunpack.c.h.b16 %v1530
    %v1868 = vunpack.c.l.b16 %v1531
    %v1869 = vunpack.c.h.b16 %v1531
    %v1870 = vunpack.c.l.b16 %v1532
    %v1871 = vunpack.c.h.b16 %v1532
    %v1872 = vunpack.c.l.b16 %v1533
    %v1873 = vunpack.c.h.b16 %v1533
    %v1874 = vunpack.c.l.b16 %v1534
    %v1875 = vunpack.c.h.b16 %v1534
    %v1876 = vunpack.c.l.b16 %v1535
    %v1877 = vunpack.c.h.b16 %v1535
    %v1878 = vunpack.c.l.b16 %v1536
    %v1879 = vunpack.c.h.b16 %v1536
    %v1880 = vunpack.c.l.b16 %v1537
    %v1881 = vunpack.c.h.b16 %v1537
    %v1882 = vunpack.c.l.b16 %v1538
    %v1883 = vunpack.c.h.b16 %v1538
    %v1884 = vunpack.c.l.b16 %v1539
    %v1885 = vunpack.c.h.b16 %v1539
    %v1886 = vunpack.c.l.b16 %v1540
    %v1887 = vunpack.c.h.b16 %v1540
    %v1888 = vunpack.c.l.b16 %v1541
    %v1889 = vunpack.c.h.b16 %v1541
    %v1890 = vunpack.c.l.b16 %v1542
    %v1891 = vunpack.c.h.b16 %v1542
    %v1892 = vunpack.c.l.b16 %v1543
    %v1893 = vunpack.c.h.b16 %v1543
    %v1894 = vunpack.c.l.b16 %v1544
    %v1895 = vunpack.c.h.b16 %v1544
    %v1896 = vunpack.c.l.b16 %v1545
    %v1897 = vunpack.c.h.b16 %v1545
    %v1898 = vunpack.c.l.b16 %v1546
    %v1899 = vunpack.c.h.b16 %v1546
    %v1900 = vunpack.c.l.b16 %v1547
    %v1901 = vunpack.c.h.b16 %v1547
    %v1902 = vunpack.c.l.b16 %v1548
    %v1903 = vunpack.c.h.b16 %v1548
    %v1904 = vunpack.c.l.b16 %v1549
    %v1905 = vunpack.c.h.b16 %v1549
    %v1906 = vunpack.c.l.b16 %v1550
    %v1907 = vunpack.c.h.b16 %v1550
    %v1908 = vunpack.c.l.b16 %v1551
    %v1909 = vunpack.c.h.b16 %v1551
    %v1910 = vunpack.c.l.b16 %v1552
    %v1911 = vunpack.c.h.b16 %v1552
    %v1912 = vunpack.c.l.b16 %v1553
    %v1913 = vunpack.c.h.b16 %v1553
    %v1914 = vunpack.c.l.b16 %v1554
    %v1915 = vunpack.c.h.b16 %v1554
    %v1916 = vunpack.c.l.b16 %v1555
    %v1917 = vunpack.c.h.b16 %v1555
    %v1918 = vunpack.c.l.b16 %v1556
    %v1919 = vunpack.c.h.b16 %v1556
    %v1920 = vunpack.c.l.b16 %v1557
    %v1921 = vunpack.c.h.b16 %v1557
    %v1922 = vunpack.c.l.b16 %v1558
    %v1923 = vunpack.c.h.b16 %v1558
    %v1924 = vunpack.c.l.b16 %v1559
    %v1925 = vunpack.c.h.b16 %v1559
    %v1926 = vunpack.c.l.b16 %v1560
    %v1927 = vunpack.c.h.b16 %v1560
    %v1928 = vunpack.c.l.b16 %v1561
    %v1929 = vunpack.c.h.b16 %v1561
    %v1930 = vunpack.c.l.b16 %v1562
    %v1931 = vunpack.c.h.b16 %v1562
    %v1932 = vunpack.c.l.b16 %v1563
    %v1933 = vunpack.c.h.b16 %v1563
    %v1934 = vunpack.c.l.b16 %v1564
    %v1935 = vunpack.c.h.b16 %v1564
    %v1936 = vunpack.c.l.b16 %v1565
    %v1937 = vunpack.c.h.b16 %v1565
    %v1938 = vunpack.c.l.b16 %v1566
    %v1939 = vunpack.c.h.b16 %v1566
    %v1940 = vunpack.c.l.b16 %v1567
    %v1941 = vunpack.c.h.b16 %v1567
    %v1942 = vunpack.c.l.b16 %v1568
    %v1943 = vunpack.c.h.b16 %v1568
    %v1944 = vunpack.c.l.b16 %v1569
    %v1945 = vunpack.c.h.b16 %v1569
    %v1946 = vunpack.c.l.b16 %v1570
    %v1947 = vunpack.c.h.b16 %v1570
    %v1948 = vunpack.c.l.b16 %v1571
    %v1949 = vunpack.c.h.b16 %v1571
    %v1950 = vunpack.c.l.b16 %v1572
    %v1951 = vunpack.c.h.b16 %v1572
    %v1952 = vunpack.c.l.b16 %v1573
    %v1953 = vunpack.c.h.b16 %v1573
    %v1954 = vunpack.c.l.b16 %v1574
    %v1955 = vunpack.c.h.b16 %v1574
    %v1956 = vunpack.c.l.b16 %v1575
    %v1957 = vunpack.c.h.b16 %v1575
    %v1958 = vunpack.c.l.b16 %v1576
    %v1959 = vunpack.c.h.b16 %v1576
    %v1960 = vunpack.c.l.b16 %v1577
    %v1961 = vunpack.c.h.b16 %v1577
    %v1962 = vunpack.c.l.b16 %v1578
    %v1963 = vunpack.c.h.b16 %v1578
    %v1964 = vunpack.c.l.b16 %v1579
    %v1965 = vunpack.c.h.b16 %v1579
    %v1966 = vunpack.c.l.b16 %v1580
    %v1967 = vunpack.c.h.b16 %v1580
    %v1968 = vunpack.c.l.b16 %v1581
    %v1969 = vunpack.c.h.b16 %v1581
    %v1970 = vunpack.c.l.b16 %v1582
    %v1971 = vunpack.c.h.b16 %v1582
    %v1972 = vunpack.c.l.b16 %v1583
    %v1973 = vunpack.c.h.b16 %v1583
    %v1974 = vunpack.c.l.b16 %v1584
    %v1975 = vunpack.c.h.b16 %v1584
    %v1976 = vunpack.c.l.b16 %v1585
    %v1977 = vunpack.c.h.b16 %v1585
    %v1978 = vunpack.c.l.b16 %v1586
    %v1979 = vunpack.c.h.b16 %v1586
    %v1980 = vunpack.c.l.b16 %v1587
    %v1981 = vunpack.c.h.b16 %v1587
    %v1982 = vunpack.c.l.b16 %v1588
    %v1983 = vunpack.c.h.b16 %v1588
    %v1984 = vunpack.c.l.b16 %v1589
    %v1985 = vunpack.c.h.b16 %v1589
    %v1986 = vunpack.c.l.b16 %v1590
    %v1987 = vunpack.c.h.b16 %v1590
    %v1988 = vunpack.c.l.b16 %v1591
    %v1989 = vunpack.c.h.b16 %v1591
    %v1990 = vunpack.c.l.b16 %v1592
    %v1991 = vunpack.c.h.b16 %v1592
    %v1992 = vunpack.c.l.b16 %v1593
    %v1993 = vunpack.c.h.b16 %v1593
    %v1994 = vunpack.c.l.b16 %v1594
    %v1995 = vunpack.c.h.b16 %v1594
    %v1996 = vunpack.c.l.b16 %v1595
    %v1997 = vunpack.c.h.b16 %v1595
    %v1998 = vunpack.c.l.b16 %v1596
    %v1999 = vunpack.c.h.b16 %v1596
    %v2000 = vunpack.c.l.b16 %v1597
    %v2001 = vunpack.c.h.b16 %v1597
    %v2002 = vunpack.c.l.b16 %v1598
    %v2003 = vunpack.c.h.b16 %v1598
    %v2004 = vunpack.c.l.b16 %v1599
    %v2005 = vunpack.c.h.b16 %v1599
    %v2006 = vpack.c.b16 %v1754, %v1750
    %v2007 = vpack.c.b16 %v1755, %v1751
    %v2008 = vpack.c.b16 %v1756, %v1752
    %v2009 = vpack.c.b16 %v1757, %v1753
    %v2010 = vpack.c.b16 %v1762, %v1758
    %v2011 = vpack.c.b16 %v1763, %v1759
    %v2012 = vpack.c.b16 %v1764, %v1760
    %v2013 = vpack.c.b16 %v1765, %v1761
    %v2014 = vpack.c.b16 %v1770, %v1766
    %v2015 = vpack.c.b16 %v1771, %v1767
    %v2016 = vpack.c.b16 %v1772, %v1768
    %v2017 = vpack.c.b16 %v1773, %v1769
    %v2018 = vpack.c.b16 %v1778, %v1774
    %v2019 = vpack.c.b16 %v1779, %v1775
    %v2020 = vpack.c.b16 %v1780, %v1776
    %v2021 = vpack.c.b16 %v1781, %v1777
    %v2022 = vpack.c.b16 %v1786, %v1782
    %v2023 = vpack.c.b16 %v1787, %v1783
    %v2024 = vpack.c.b16 %v1788, %v1784
    %v2025 = vpack.c.b16 %v1789, %v1785
    %v2026 = vpack.c.b16 %v1794, %v1790
    %v2027 = vpack.c.b16 %v1795, %v1791
    %v2028 = vpack.c.b16 %v1796, %v1792
    %v2029 = vpack.c.b16 %v1797, %v1793
    %v2030 = vpack.c.b16 %v1802, %v1798
    %v2031 = vpack.c.b16 %v1803, %v1799
    %v2032 = vpack.c.b16 %v1804, %v1800
    %v2033 = vpack.c.b16 %v1805, %v1801
    %v2034 = vpack.c.b16 %v1810, %v1806
    %v2035 = vpack.c.b16 %v1811, %v1807
    %v2036 = vpack.c.b16 %v1812, %v1808
    %v2037 = vpack.c.b16 %v1813, %v1809
    %v2038 = vpack.c.b16 %v1818, %v1814
    %v2039 = vpack.c.b16 %v1819, %v1815
    %v2040 = vpack.c.b16 %v1820, %v1816
    %v2041 = vpack.c.b16 %v1821, %v1817
    %v2042 = vpack.c.b16 %v1826, %v1822
    %v2043 = vpack.c.b16 %v1827, %v1823
    %v2044 = vpack.c.b16 %v1828, %v1824
    %v2045 = vpack.c.b16 %v1829, %v1825
    %v2046 = vpack.c.b16 %v1834, %v1830
    %v2047 = vpack.c.b16 %v1835, %v1831
    %v2048 = vpack.c.b16 %v1836, %v1832
    %v2049 = vpack.c.b16 %v1837, %v1833
    %v2050 = vpack.c.b16 %v1842, %v1838
    %v2051 = vpack.c.b16 %v1843, %v1839
    %v2052 = vpack.c.b16 %v1844, %v1840
    %v2053 = vpack.c.b16 %v1845, %v1841
    %v2054 = vpack.c.b16 %v1850, %v1846
    %v2055 = vpack.c.b16 %v1851, %v1847
    %v2056 = vpack.c.b16 %v1852, %v1848
    %v2057 = vpack.c.b16 %v1853, %v1849
    %v2058 = vpack.c.b16 %v1858, %v1854
    %v2059 = vpack.c.b16 %v1859, %v1855
    %v2060 = vpack.c.b16 %v1860, %v1856
    %v2061 = vpack.c.b16 %v1861, %v1857
    %v2062 = vpack.c.b16 %v1866, %v1862
    %v2063 = vpack.c.b16 %v1867, %v1863
    %v2064 = vpack.c.b16 %v1868, %v1864
    %v2065 = vpack.c.b16 %v1869, %v1865
    %v2066 = vpack.c.b16 %v1874, %v1870
    %v2067 = vpack.c.b16 %v1875, %v1871
    %v2068 = vpack.c.b16 %v1876, %v1872
    %v2069 = vpack.c.b16 %v1877, %v1873
    %v2070 = vpack.c.b16 %v1882, %v1878
    %v2071 = vpack.c.b16 %v1883, %v1879
    %v2072 = vpack.c.b16 %v1884, %v1880
    %v2073 = vpack.c.b16 %v1885, %v1881
    %v2074 = vpack.c.b16 %v1890, %v1886
    %v2075 = vpack.c.b16 %v1891, %v1887
    %v2076 = vpack.c.b16 %v1892, %v1888
    %v2077 = vpack.c.b16 %v1893, %v1889
    %v2078 = vpack.c.b16 %v1898, %v1894
    %v2079 = vpack.c.b16 %v1899, %v1895
    %v2080 = vpack.c.b16 %v1900, %v1896
    %v2081 = vpack.c.b16 %v1901, %v1897
    %v2082 = vpack.c.b16 %v1906, %v1902
    %v2083 = vpack.c.b16 %v1907, %v1903
    %v2084 = vpack.c.b16 %v1908, %v1904
    %v2085 = vpack.c.b16 %v1909, %v1905
    %v2086 = vpack.c.b16 %v1914, %v1910
    %v2087 = vpack.c.b16 %v1915, %v1911
    %v2088 = vpack.c.b16 %v1916, %v1912
    %v2089 = vpack.c.b16 %v1917, %v1913
    %v2090 = vpack.c.b16 %v1922, %v1918
    %v2091 = vpack.c.b16 %v1923, %v1919
    %v2092 = vpack.c.b16 %v1924, %v1920
    %v2093 = vpack.c.b16 %v1925, %v1921
    %v2094 = vpack.c.b16 %v1930, %v1926
    %v2095 = vpack.c.b16 %v1931, %v1927
    %v2096 = vpack.c.b16 %v1932, %v1928
    %v2097 = vpack.c.b16 %v1933, %v1929
    %v2098 = vpack.c.b16 %v1938, %v1934
    %v2099 = vpack.c.b16 %v1939, %v1935
    %v2100 = vpack.c.b16 %v1940, %v1936
    %v2101 = vpack.c.b16 %v1941, %v1937
    %v2102 = vpack.c.b16 %v1946, %v1942
    %v2103 = vpack.c.b16 %v1947, %v1943
    %v2104 = vpack.c.b16 %v1948, %v1944
    %v2105 = vpack.c.b16 %v1949, %v1945
    %v2106 = vpack.c.b16 %v1954, %v1950
    %v2107 = vpack.c.b16 %v1955, %v1951
    %v2108 = vpack.c.b16 %v1956, %v1952
    %v2109 = vpack.c.b16 %v1957, %v1953
    %v2110 = vpack.c.b16 %v1962, %v1958
    %v2111 = vpack.c.b16 %v1963, %v1959
    %v2112 = vpack.c.b16 %v1964, %v1960
    %v2113 = vpack.c.b16 %v1965, %v1961
    %v2114 = vpack.c.b16 %v1970, %v1966
    %v2115 = vpack.c.b16 %v1971, %v1967
    %v2116 = vpack.c.b16 %v1972, %v1968
    %v2117 = vpack.c.b16 %v1973, %v1969
    %v2118 = vpack.c.b16 %v1978, %v1974
    %v2119 = vpack.c.b16 %v1979, %v1975
    %v2120 = vpack.c.b16 %v1980, %v1976
    %v2121 = vpack.c.b16 %v1981, %v1977
    %v2122 = vpack.c.b16 %v1986, %v1982
    %v2123 = vpack.c.b16 %v1987, %v1983
    %v2124 = vpack.c.b16 %v1988, %v1984
    %v2125 = vpack.c.b16 %v1989, %v1985
    %v2126 = vpack.c.b16 %v1994, %v1990
    %v2127 = vpack.c.b16 %v1995, %v1991
    %v2128 = vpack.c.b16 %v1996, %v1992
    %v2129 = vpack.c.b16 %v1997, %v1993
    %v2130 = vpack.c.b16 %v2002, %v1998
    %v2131 = vpack.c.b16 %v2003, %v1999
    %v2132 = vpack.c.b16 %v2004, %v2000
    %v2133 = vpack.c.b16 %v2005, %v2001
    %2262 = vmatprep.subr.bf16.mxu0 %v2007
    %2263 = vmatpush1.bf16.msra.mxu0 %v2006
    %2264 = vmatprep.subr.bf16.mxu0 %v2011
    %2265 = vmatpush1.bf16.msra.mxu0 %v2010
    %2266 = vmatprep.subr.bf16.mxu0 %v2015
    %2267 = vmatpush1.bf16.msra.mxu0 %v2014
    %2268 = vmatprep.subr.bf16.mxu0 %v2019
    %2269 = vmatpush1.bf16.msra.mxu0 %v2018
    %2270 = vmatprep.subr.bf16.mxu0 %v2023
    %2271 = vmatpush1.bf16.msra.mxu0 %v2022
    %2272 = vmatprep.subr.bf16.mxu0 %v2027
    %2273 = vmatpush1.bf16.msra.mxu0 %v2026
    %2274 = vmatprep.subr.bf16.mxu0 %v2031
    %2275 = vmatpush1.bf16.msra.mxu0 %v2030
    %2276 = vmatprep.subr.bf16.mxu0 %v2035
    %2277 = vmatpush1.bf16.msra.mxu0 %v2034
    %2278 = vmatprep.subr.bf16.mxu0 %v2039
    %2279 = vmatpush1.bf16.msra.mxu0 %v2038
    %2280 = vmatprep.subr.bf16.mxu0 %v2043
    %2281 = vmatpush1.bf16.msra.mxu0 %v2042
    %2282 = vmatprep.subr.bf16.mxu0 %v2047
    %2283 = vmatpush1.bf16.msra.mxu0 %v2046
    %2284 = vmatprep.subr.bf16.mxu0 %v2051
    %2285 = vmatpush1.bf16.msra.mxu0 %v2050
    %2286 = vmatprep.subr.bf16.mxu0 %v2055
    %2287 = vmatpush1.bf16.msra.mxu0 %v2054
    %2288 = vmatprep.subr.bf16.mxu0 %v2059
    %2289 = vmatpush1.bf16.msra.mxu0 %v2058
    %2290 = vmatprep.subr.bf16.mxu0 %v2063
    %2291 = vmatpush1.bf16.msra.mxu0 %v2062
    %2292 = vmatprep.subr.bf16.mxu0 %v2067
    %2293 = vmatpush1.bf16.msra.mxu0 %v2066
    %2294 = vmatprep.mubr.bf16.mxu0 %v499
    %2295 = vmatmul.mubr.bf16.gmra.mrb[0].mxu0 %v498
    %v2296 = vpop.f32.mrb[0].mxu0
    %v2297 = vadd.f32 %v1605, %v2296
    %v2298 = vpop.f32.mrb[0].mxu0
    %v2299 = vadd.f32 %v1609, %v2298
    %v2300 = vpop.f32.mrb[0].mxu0
    %v2301 = vadd.f32 %v1605, %v2300
    %v2302 = vpop.f32.mrb[0].mxu0
    %v2303 = vadd.f32 %v1609, %v2302
    %2304 = vdwg.mxu0
    %2305 = vmatprep.subr.bf16.mxu0 %v2071
    %2306 = vmatpush1.bf16.msra.mxu0 %v2070
    %2307 = vmatprep.subr.bf16.mxu0 %v2075
    %2308 = vmatpush1.bf16.msra.mxu0 %v2074
    %2309 = vmatprep.subr.bf16.mxu0 %v2079
    %2310 = vmatpush1.bf16.msra.mxu0 %v2078
    %2311 = vmatprep.subr.bf16.mxu0 %v2083
    %2312 = vmatpush1.bf16.msra.mxu0 %v2082
    %2313 = vmatprep.subr.bf16.mxu0 %v2087
    %2314 = vmatpush1.bf16.msra.mxu0 %v2086
    %2315 = vmatprep.subr.bf16.mxu0 %v2091
    %2316 = vmatpush1.bf16.msra.mxu0 %v2090
    %2317 = vmatprep.subr.bf16.mxu0 %v2095
    %2318 = vmatpush1.bf16.msra.mxu0 %v2094
    %2319 = vmatprep.subr.bf16.mxu0 %v2099
    %2320 = vmatpush1.bf16.msra.mxu0 %v2098
    %2321 = vmatprep.subr.bf16.mxu0 %v2103
    %2322 = vmatpush1.bf16.msra.mxu0 %v2102
    %2323 = vmatprep.subr.bf16.mxu0 %v2107
    %2324 = vmatpush1.bf16.msra.mxu0 %v2106
    %2325 = vmatprep.subr.bf16.mxu0 %v2111
    %2326 = vmatpush1.bf16.msra.mxu0 %v2110
    %2327 = vmatprep.subr.bf16.mxu0 %v2115
    %2328 = vmatpush1.bf16.msra.mxu0 %v2114
    %2329 = vmatprep.subr.bf16.mxu0 %v2119
    %2330 = vmatpush1.bf16.msra.mxu0 %v2118
    %2331 = vmatprep.subr.bf16.mxu0 %v2123
    %2332 = vmatpush1.bf16.msra.mxu0 %v2122
    %2333 = vmatprep.subr.bf16.mxu0 %v2127
    %2334 = vmatpush1.bf16.msra.mxu0 %v2126
    %2335 = vmatprep.subr.bf16.mxu0 %v2131
    %2336 = vmatpush1.bf16.msra.mxu0 %v2130
    %2337 = vmatprep.mubr.bf16.mxu0 %v501
    %2338 = vmatmul.mubr.bf16.gmra.mrb[0].mxu0 %v500
    %v2339 = vpop.f32.mrb[0].mxu0
    %v2340 = vadd.f32 %v2297, %v2339
    %v2341 = vpop.f32.mrb[0].mxu0
    %v2342 = vadd.f32 %v2299, %v2341
    %v2343 = vpop.f32.mrb[0].mxu0
    %v2344 = vadd.f32 %v2301, %v2343
    %v2345 = vpop.f32.mrb[0].mxu0
    %v2346 = vadd.f32 %v2303, %v2345
    %2347 = vdwg.mxu0
    %2348 = vmatprep.subr.bf16.mxu0 %v2009
    %2349 = vmatpush1.bf16.msra.mxu0 %v2008
    %2350 = vmatprep.subr.bf16.mxu0 %v2013
    %2351 = vmatpush1.bf16.msra.mxu0 %v2012
    %2352 = vmatprep.subr.bf16.mxu0 %v2017
    %2353 = vmatpush1.bf16.msra.mxu0 %v2016
    %2354 = vmatprep.subr.bf16.mxu0 %v2021
    %2355 = vmatpush1.bf16.msra.mxu0 %v2020
    %2356 = vmatprep.subr.bf16.mxu0 %v2025
    %2357 = vmatpush1.bf16.msra.mxu0 %v2024
    %2358 = vmatprep.subr.bf16.mxu0 %v2029
    %2359 = vmatpush1.bf16.msra.mxu0 %v2028
    %2360 = vmatprep.subr.bf16.mxu0 %v2033
    %2361 = vmatpush1.bf16.msra.mxu0 %v2032
    %2362 = vmatprep.subr.bf16.mxu0 %v2037
    %2363 = vmatpush1.bf16.msra.mxu0 %v2036
    %2364 = vmatprep.subr.bf16.mxu0 %v2041
    %2365 = vmatpush1.bf16.msra.mxu0 %v2040
    %2366 = vmatprep.subr.bf16.mxu0 %v2045
    %2367 = vmatpush1.bf16.msra.mxu0 %v2044
    %2368 = vmatprep.subr.bf16.mxu0 %v2049
    %2369 = vmatpush1.bf16.msra.mxu0 %v2048
    %2370 = vmatprep.subr.bf16.mxu0 %v2053
    %2371 = vmatpush1.bf16.msra.mxu0 %v2052
    %2372 = vmatprep.subr.bf16.mxu0 %v2057
    %2373 = vmatpush1.bf16.msra.mxu0 %v2056
    %2374 = vmatprep.subr.bf16.mxu0 %v2061
    %2375 = vmatpush1.bf16.msra.mxu0 %v2060
    %2376 = vmatprep.subr.bf16.mxu0 %v2065
    %2377 = vmatpush1.bf16.msra.mxu0 %v2064
    %2378 = vmatprep.subr.bf16.mxu0 %v2069
    %2379 = vmatpush1.bf16.msra.mxu0 %v2068
    %2380 = vmatprep.mubr.bf16.mxu0 %v499
    %2381 = vmatmul.mubr.bf16.gmra.mrb[0].mxu0 %v498
    %v2382 = vpop.f32.mrb[0].mxu0
    %v2383 = vadd.f32 %v1613, %v2382
    %v2384 = vpop.f32.mrb[0].mxu0
    %v2385 = vadd.f32 %v1617, %v2384
    %v2386 = vpop.f32.mrb[0].mxu0
    %v2387 = vadd.f32 %v1613, %v2386
    %v2388 = vpop.f32.mrb[0].mxu0
    %v2389 = vadd.f32 %v1617, %v2388
    %2390 = vdwg.mxu0
    %2391 = vmatprep.subr.bf16.mxu0 %v2073
    %2392 = vmatpush1.bf16.msra.mxu0 %v2072
    %2393 = vmatprep.subr.bf16.mxu0 %v2077
    %2394 = vmatpush1.bf16.msra.mxu0 %v2076
    %2395 = vmatprep.subr.bf16.mxu0 %v2081
    %2396 = vmatpush1.bf16.msra.mxu0 %v2080
    %2397 = vmatprep.subr.bf16.mxu0 %v2085
    %2398 = vmatpush1.bf16.msra.mxu0 %v2084
    %2399 = vmatprep.subr.bf16.mxu0 %v2089
    %2400 = vmatpush1.bf16.msra.mxu0 %v2088
    %2401 = vmatprep.subr.bf16.mxu0 %v2093
    %2402 = vmatpush1.bf16.msra.mxu0 %v2092
    %2403 = vmatprep.subr.bf16.mxu0 %v2097
    %2404 = vmatpush1.bf16.msra.mxu0 %v2096
    %2405 = vmatprep.subr.bf16.mxu0 %v2101
    %2406 = vmatpush1.bf16.msra.mxu0 %v2100
    %2407 = vmatprep.subr.bf16.mxu0 %v2105
    %2408 = vmatpush1.bf16.msra.mxu0 %v2104
    %2409 = vmatprep.subr.bf16.mxu0 %v2109
    %2410 = vmatpush1.bf16.msra.mxu0 %v2108
    %2411 = vmatprep.subr.bf16.mxu0 %v2113
    %2412 = vmatpush1.bf16.msra.mxu0 %v2112
    %2413 = vmatprep.subr.bf16.mxu0 %v2117
    %2414 = vmatpush1.bf16.msra.mxu0 %v2116
    %2415 = vmatprep.subr.bf16.mxu0 %v2121
    %2416 = vmatpush1.bf16.msra.mxu0 %v2120
    %2417 = vmatprep.subr.bf16.mxu0 %v2125
    %2418 = vmatpush1.bf16.msra.mxu0 %v2124
    %2419 = vmatprep.subr.bf16.mxu0 %v2129
    %2420 = vmatpush1.bf16.msra.mxu0 %v2128
    %2421 = vmatprep.subr.bf16.mxu0 %v2133
    %2422 = vmatpush1.bf16.msra.mxu0 %v2132
    %2423 = vmatprep.mubr.bf16.mxu0 %v501
    %2424 = vmatmul.mubr.bf16.gmra.mrb[0].mxu0 %v500
    %v2425 = vpop.f32.mrb[0].mxu0
    %v2426 = vadd.f32 %v2383, %v2425
    %v2427 = vpop.f32.mrb[0].mxu0
    %v2428 = vadd.f32 %v2385, %v2427
    %v2429 = vpop.f32.mrb[0].mxu0
    %v2430 = vadd.f32 %v2387, %v2429
    %v2431 = vpop.f32.mrb[0].mxu0
    %v2432 = vadd.f32 %v2389, %v2431
    %2433 = vdwg.mxu0
    %v2434 = vpack.c.bf16 %v2344, %v2340
    %v2435 = vpack.c.bf16 %v2346, %v2342
    %v2436 = vpack.c.bf16 %v2430, %v2426
    %v2437 = vpack.c.bf16 %v2432, %v2428
    %v2438 = vtanh.bf16.pop %v2434
    %v2439 = vtanh.bf16.pop %v2435
    %v2440 = vtanh.bf16.pop %v2436
    %v2441 = vtanh.bf16.pop %v2437
    %v2442 = vld [vmem:[#allocation14] sm:$0xf]
    %v2443 = vld [vmem:[#allocation14 + $0x4] sm:$0xf]
    %v2444 = vld [vmem:[#allocation14 + $0x8] sm:$0xf]
    %v2445 = vld [vmem:[#allocation14 + $0xc] sm:$0xf]
    %v2446 = vld [vmem:[#allocation14 + $0x10] sm:$0xf]
    %v2447 = vld [vmem:[#allocation14 + $0x14] sm:$0xf]
    %v2448 = vld [vmem:[#allocation14 + $0x18] sm:$0xf]
    %v2449 = vld [vmem:[#allocation14 + $0x1c] sm:$0xf]
    %v2450 = vld [vmem:[#allocation14 + $0x20] sm:$0xf]
    %v2451 = vld [vmem:[#allocation14 + $0x24] sm:$0xf]
    %v2452 = vld [vmem:[#allocation14 + $0x28] sm:$0xf]
    %v2453 = vld [vmem:[#allocation14 + $0x2c] sm:$0xf]
    %v2454 = vld [vmem:[#allocation14 + $0x30] sm:$0xf]
    %v2455 = vld [vmem:[#allocation14 + $0x34] sm:$0xf]
    %v2456 = vld [vmem:[#allocation14 + $0x38] sm:$0xf]
    %v2457 = vld [vmem:[#allocation14 + $0x3c] sm:$0xf]
    %v2458 = vld [vmem:[#allocation14 + $0x40] sm:$0xf]
    %v2459 = vld [vmem:[#allocation14 + $0x44] sm:$0xf]
    %v2460 = vld [vmem:[#allocation14 + $0x48] sm:$0xf]
    %v2461 = vld [vmem:[#allocation14 + $0x4c] sm:$0xf]
    %v2462 = vld [vmem:[#allocation14 + $0x50] sm:$0xf]
    %v2463 = vld [vmem:[#allocation14 + $0x54] sm:$0xf]
    %v2464 = vld [vmem:[#allocation14 + $0x58] sm:$0xf]
    %v2465 = vld [vmem:[#allocation14 + $0x5c] sm:$0xf]
    %v2466 = vld [vmem:[#allocation14 + $0x60] sm:$0xf]
    %v2467 = vld [vmem:[#allocation14 + $0x64] sm:$0xf]
    %v2468 = vld [vmem:[#allocation14 + $0x68] sm:$0xf]
    %v2469 = vld [vmem:[#allocation14 + $0x6c] sm:$0xf]
    %v2470 = vld [vmem:[#allocation14 + $0x70] sm:$0xf]
    %v2471 = vld [vmem:[#allocation14 + $0x74] sm:$0xf]
    %v2472 = vld [vmem:[#allocation14 + $0x78] sm:$0xf]
    %v2473 = vld [vmem:[#allocation14 + $0x7c] sm:$0xf]
    %v2474 = vld [vmem:[#allocation14 + $0x80] sm:$0xf]
    %v2475 = vld [vmem:[#allocation14 + $0x84] sm:$0xf]
    %v2476 = vld [vmem:[#allocation14 + $0x88] sm:$0xf]
    %v2477 = vld [vmem:[#allocation14 + $0x8c] sm:$0xf]
    %v2478 = vld [vmem:[#allocation14 + $0x90] sm:$0xf]
    %v2479 = vld [vmem:[#allocation14 + $0x94] sm:$0xf]
    %v2480 = vld [vmem:[#allocation14 + $0x98] sm:$0xf]
    %v2481 = vld [vmem:[#allocation14 + $0x9c] sm:$0xf]
    %v2482 = vld [vmem:[#allocation14 + $0xa0] sm:$0xf]
    %v2483 = vld [vmem:[#allocation14 + $0xa4] sm:$0xf]
    %v2484 = vld [vmem:[#allocation14 + $0xa8] sm:$0xf]
    %v2485 = vld [vmem:[#allocation14 + $0xac] sm:$0xf]
    %v2486 = vld [vmem:[#allocation14 + $0xb0] sm:$0xf]
    %v2487 = vld [vmem:[#allocation14 + $0xb4] sm:$0xf]
    %v2488 = vld [vmem:[#allocation14 + $0xb8] sm:$0xf]
    %v2489 = vld [vmem:[#allocation14 + $0xbc] sm:$0xf]
    %v2490 = vld [vmem:[#allocation14 + $0xc0] sm:$0xf]
    %v2491 = vld [vmem:[#allocation14 + $0xc4] sm:$0xf]
    %v2492 = vld [vmem:[#allocation14 + $0xc8] sm:$0xf]
    %v2493 = vld [vmem:[#allocation14 + $0xcc] sm:$0xf]
    %v2494 = vld [vmem:[#allocation14 + $0xd0] sm:$0xf]
    %v2495 = vld [vmem:[#allocation14 + $0xd4] sm:$0xf]
    %v2496 = vld [vmem:[#allocation14 + $0xd8] sm:$0xf]
    %v2497 = vld [vmem:[#allocation14 + $0xdc] sm:$0xf]
    %v2498 = vld [vmem:[#allocation14 + $0xe0] sm:$0xf]
    %v2499 = vld [vmem:[#allocation14 + $0xe4] sm:$0xf]
    %v2500 = vld [vmem:[#allocation14 + $0xe8] sm:$0xf]
    %v2501 = vld [vmem:[#allocation14 + $0xec] sm:$0xf]
    %v2502 = vld [vmem:[#allocation14 + $0xf0] sm:$0xf]
    %v2503 = vld [vmem:[#allocation14 + $0xf4] sm:$0xf]
    %v2504 = vld [vmem:[#allocation14 + $0xf8] sm:$0xf]
    %v2505 = vld [vmem:[#allocation14 + $0xfc] sm:$0xf]
    %v2506 = vld [vmem:[#allocation16] sm:$0xf]
    %v2507 = vld [vmem:[#allocation16 + $0x4] sm:$0xf]
    %v2508 = vld [vmem:[#allocation16 + $0x8] sm:$0xf]
    %v2509 = vld [vmem:[#allocation16 + $0xc] sm:$0xf]
    %v2510 = vld [vmem:[#allocation16 + $0x10] sm:$0xf]
    %v2511 = vld [vmem:[#allocation16 + $0x14] sm:$0xf]
    %v2512 = vld [vmem:[#allocation16 + $0x18] sm:$0xf]
    %v2513 = vld [vmem:[#allocation16 + $0x1c] sm:$0xf]
    %v2514 = vld [vmem:[#allocation16 + $0x20] sm:$0xf]
    %v2515 = vld [vmem:[#allocation16 + $0x24] sm:$0xf]
    %v2516 = vld [vmem:[#allocation16 + $0x28] sm:$0xf]
    %v2517 = vld [vmem:[#allocation16 + $0x2c] sm:$0xf]
    %v2518 = vld [vmem:[#allocation16 + $0x30] sm:$0xf]
    %v2519 = vld [vmem:[#allocation16 + $0x34] sm:$0xf]
    %v2520 = vld [vmem:[#allocation16 + $0x38] sm:$0xf]
    %v2521 = vld [vmem:[#allocation16 + $0x3c] sm:$0xf]
    %v2522 = vld [vmem:[#allocation16 + $0x40] sm:$0xf]
    %v2523 = vld [vmem:[#allocation16 + $0x44] sm:$0xf]
    %v2524 = vld [vmem:[#allocation16 + $0x48] sm:$0xf]
    %v2525 = vld [vmem:[#allocation16 + $0x4c] sm:$0xf]
    %v2526 = vld [vmem:[#allocation16 + $0x50] sm:$0xf]
    %v2527 = vld [vmem:[#allocation16 + $0x54] sm:$0xf]
    %v2528 = vld [vmem:[#allocation16 + $0x58] sm:$0xf]
    %v2529 = vld [vmem:[#allocation16 + $0x5c] sm:$0xf]
    %v2530 = vld [vmem:[#allocation16 + $0x60] sm:$0xf]
    %v2531 = vld [vmem:[#allocation16 + $0x64] sm:$0xf]
    %v2532 = vld [vmem:[#allocation16 + $0x68] sm:$0xf]
    %v2533 = vld [vmem:[#allocation16 + $0x6c] sm:$0xf]
    %v2534 = vld [vmem:[#allocation16 + $0x70] sm:$0xf]
    %v2535 = vld [vmem:[#allocation16 + $0x74] sm:$0xf]
    %v2536 = vld [vmem:[#allocation16 + $0x78] sm:$0xf]
    %v2537 = vld [vmem:[#allocation16 + $0x7c] sm:$0xf]
    %v2538 = vld [vmem:[#allocation16 + $0x80] sm:$0xf]
    %v2539 = vld [vmem:[#allocation16 + $0x84] sm:$0xf]
    %v2540 = vld [vmem:[#allocation16 + $0x88] sm:$0xf]
    %v2541 = vld [vmem:[#allocation16 + $0x8c] sm:$0xf]
    %v2542 = vld [vmem:[#allocation16 + $0x90] sm:$0xf]
    %v2543 = vld [vmem:[#allocation16 + $0x94] sm:$0xf]
    %v2544 = vld [vmem:[#allocation16 + $0x98] sm:$0xf]
    %v2545 = vld [vmem:[#allocation16 + $0x9c] sm:$0xf]
    %v2546 = vld [vmem:[#allocation16 + $0xa0] sm:$0xf]
    %v2547 = vld [vmem:[#allocation16 + $0xa4] sm:$0xf]
    %v2548 = vld [vmem:[#allocation16 + $0xa8] sm:$0xf]
    %v2549 = vld [vmem:[#allocation16 + $0xac] sm:$0xf]
    %v2550 = vld [vmem:[#allocation16 + $0xb0] sm:$0xf]
    %v2551 = vld [vmem:[#allocation16 + $0xb4] sm:$0xf]
    %v2552 = vld [vmem:[#allocation16 + $0xb8] sm:$0xf]
    %v2553 = vld [vmem:[#allocation16 + $0xbc] sm:$0xf]
    %v2554 = vld [vmem:[#allocation16 + $0xc0] sm:$0xf]
    %v2555 = vld [vmem:[#allocation16 + $0xc4] sm:$0xf]
    %v2556 = vld [vmem:[#allocation16 + $0xc8] sm:$0xf]
    %v2557 = vld [vmem:[#allocation16 + $0xcc] sm:$0xf]
    %v2558 = vld [vmem:[#allocation16 + $0xd0] sm:$0xf]
    %v2559 = vld [vmem:[#allocation16 + $0xd4] sm:$0xf]
    %v2560 = vld [vmem:[#allocation16 + $0xd8] sm:$0xf]
    %v2561 = vld [vmem:[#allocation16 + $0xdc] sm:$0xf]
    %v2562 = vld [vmem:[#allocation16 + $0xe0] sm:$0xf]
    %v2563 = vld [vmem:[#allocation16 + $0xe4] sm:$0xf]
    %v2564 = vld [vmem:[#allocation16 + $0xe8] sm:$0xf]
    %v2565 = vld [vmem:[#allocation16 + $0xec] sm:$0xf]
    %v2566 = vld [vmem:[#allocation16 + $0xf0] sm:$0xf]
    %v2567 = vld [vmem:[#allocation16 + $0xf4] sm:$0xf]
    %v2568 = vld [vmem:[#allocation16 + $0xf8] sm:$0xf]
    %v2569 = vld [vmem:[#allocation16 + $0xfc] sm:$0xf]
    %v2634 = vunpack.c.l.b16 %v2506
    %v2635 = vunpack.c.l.b16 %v2507
    %v2636 = vunpack.c.l.b16 %v2508
    %v2637 = vunpack.c.l.b16 %v2509
    %v2638 = vunpack.c.l.b16 %v2510
    %v2639 = vunpack.c.l.b16 %v2511
    %v2640 = vunpack.c.l.b16 %v2512
    %v2641 = vunpack.c.l.b16 %v2513
    %v2642 = vunpack.c.l.b16 %v2514
    %v2643 = vunpack.c.l.b16 %v2515
    %v2644 = vunpack.c.l.b16 %v2516
    %v2645 = vunpack.c.l.b16 %v2517
    %v2646 = vunpack.c.l.b16 %v2518
    %v2647 = vunpack.c.l.b16 %v2519
    %v2648 = vunpack.c.l.b16 %v2520
    %v2649 = vunpack.c.l.b16 %v2521
    %v2650 = vunpack.c.l.b16 %v2522
    %v2651 = vunpack.c.l.b16 %v2523
    %v2652 = vunpack.c.l.b16 %v2524
    %v2653 = vunpack.c.l.b16 %v2525
    %v2654 = vunpack.c.l.b16 %v2526
    %v2655 = vunpack.c.l.b16 %v2527
    %v2656 = vunpack.c.l.b16 %v2528
    %v2657 = vunpack.c.l.b16 %v2529
    %v2658 = vunpack.c.l.b16 %v2530
    %v2659 = vunpack.c.l.b16 %v2531
    %v2660 = vunpack.c.l.b16 %v2532
    %v2661 = vunpack.c.l.b16 %v2533
    %v2662 = vunpack.c.l.b16 %v2534
    %v2663 = vunpack.c.l.b16 %v2535
    %v2664 = vunpack.c.l.b16 %v2536
    %v2665 = vunpack.c.l.b16 %v2537
    %v2666 = vunpack.c.l.b16 %v2538
    %v2667 = vunpack.c.l.b16 %v2539
    %v2668 = vunpack.c.l.b16 %v2540
    %v2669 = vunpack.c.l.b16 %v2541
    %v2670 = vunpack.c.l.b16 %v2542
    %v2671 = vunpack.c.l.b16 %v2543
    %v2672 = vunpack.c.l.b16 %v2544
    %v2673 = vunpack.c.l.b16 %v2545
    %v2674 = vunpack.c.l.b16 %v2546
    %v2675 = vunpack.c.l.b16 %v2547
    %v2676 = vunpack.c.l.b16 %v2548
    %v2677 = vunpack.c.l.b16 %v2549
    %v2678 = vunpack.c.l.b16 %v2550
    %v2679 = vunpack.c.l.b16 %v2551
    %v2680 = vunpack.c.l.b16 %v2552
    %v2681 = vunpack.c.l.b16 %v2553
    %v2682 = vunpack.c.l.b16 %v2554
    %v2683 = vunpack.c.l.b16 %v2555
    %v2684 = vunpack.c.l.b16 %v2556
    %v2685 = vunpack.c.l.b16 %v2557
    %v2686 = vunpack.c.l.b16 %v2558
    %v2687 = vunpack.c.l.b16 %v2559
    %v2688 = vunpack.c.l.b16 %v2560
    %v2689 = vunpack.c.l.b16 %v2561
    %v2690 = vunpack.c.l.b16 %v2562
    %v2691 = vunpack.c.l.b16 %v2563
    %v2692 = vunpack.c.l.b16 %v2564
    %v2693 = vunpack.c.l.b16 %v2565
    %v2694 = vunpack.c.l.b16 %v2566
    %v2695 = vunpack.c.l.b16 %v2567
    %v2696 = vunpack.c.l.b16 %v2568
    %v2697 = vunpack.c.l.b16 %v2569
    %v2698 = vpack.c.b16 %v2635, %v2634
    %v2699 = vpack.c.b16 %v2637, %v2636
    %v2700 = vpack.c.b16 %v2639, %v2638
    %v2701 = vpack.c.b16 %v2641, %v2640
    %v2702 = vpack.c.b16 %v2643, %v2642
    %v2703 = vpack.c.b16 %v2645, %v2644
    %v2704 = vpack.c.b16 %v2647, %v2646
    %v2705 = vpack.c.b16 %v2649, %v2648
    %v2706 = vpack.c.b16 %v2651, %v2650
    %v2707 = vpack.c.b16 %v2653, %v2652
    %v2708 = vpack.c.b16 %v2655, %v2654
    %v2709 = vpack.c.b16 %v2657, %v2656
    %v2710 = vpack.c.b16 %v2659, %v2658
    %v2711 = vpack.c.b16 %v2661, %v2660
    %v2712 = vpack.c.b16 %v2663, %v2662
    %v2713 = vpack.c.b16 %v2665, %v2664
    %v2714 = vpack.c.b16 %v2667, %v2666
    %v2715 = vpack.c.b16 %v2669, %v2668
    %v2716 = vpack.c.b16 %v2671, %v2670
    %v2717 = vpack.c.b16 %v2673, %v2672
    %v2718 = vpack.c.b16 %v2675, %v2674
    %v2719 = vpack.c.b16 %v2677, %v2676
    %v2720 = vpack.c.b16 %v2679, %v2678
    %v2721 = vpack.c.b16 %v2681, %v2680
    %v2722 = vpack.c.b16 %v2683, %v2682
    %v2723 = vpack.c.b16 %v2685, %v2684
    %v2724 = vpack.c.b16 %v2687, %v2686
    %v2725 = vpack.c.b16 %v2689, %v2688
    %v2726 = vpack.c.b16 %v2691, %v2690
    %v2727 = vpack.c.b16 %v2693, %v2692
    %v2728 = vpack.c.b16 %v2695, %v2694
    %v2729 = vpack.c.b16 %v2697, %v2696
    %2762 = vmatprep.subr.bf16.mxu0 0
    %2763 = vmatpush1.bf16.msra.mxu0 %v2698
    %2764 = vmatprep.subr.bf16.mxu0 0
    %2765 = vmatpush1.bf16.msra.mxu0 %v2699
    %2766 = vmatprep.subr.bf16.mxu0 0
    %2767 = vmatpush1.bf16.msra.mxu0 %v2700
    %2768 = vmatprep.subr.bf16.mxu0 0
    %2769 = vmatpush1.bf16.msra.mxu0 %v2701
    %2770 = vmatprep.subr.bf16.mxu0 0
    %2771 = vmatpush1.bf16.msra.mxu0 %v2702
    %2772 = vmatprep.subr.bf16.mxu0 0
    %2773 = vmatpush1.bf16.msra.mxu0 %v2703
    %2774 = vmatprep.subr.bf16.mxu0 0
    %2775 = vmatpush1.bf16.msra.mxu0 %v2704
    %2776 = vmatprep.subr.bf16.mxu0 0
    %2777 = vmatpush1.bf16.msra.mxu0 %v2705
    %2778 = vmatprep.subr.bf16.mxu0 0
    %2779 = vmatpush1.bf16.msra.mxu0 %v2706
    %2780 = vmatprep.subr.bf16.mxu0 0
    %2781 = vmatpush1.bf16.msra.mxu0 %v2707
    %2782 = vmatprep.subr.bf16.mxu0 0
    %2783 = vmatpush1.bf16.msra.mxu0 %v2708
    %2784 = vmatprep.subr.bf16.mxu0 0
    %2785 = vmatpush1.bf16.msra.mxu0 %v2709
    %2786 = vmatprep.subr.bf16.mxu0 0
    %2787 = vmatpush1.bf16.msra.mxu0 %v2710
    %2788 = vmatprep.subr.bf16.mxu0 0
    %2789 = vmatpush1.bf16.msra.mxu0 %v2711
    %2790 = vmatprep.subr.bf16.mxu0 0
    %2791 = vmatpush1.bf16.msra.mxu0 %v2712
    %2792 = vmatprep.subr.bf16.mxu0 0
    %2793 = vmatpush1.bf16.msra.mxu0 %v2713
    %2794 = vmatprep.mubr.bf16.mxu0 %v2439
    %2795 = vmatmul.mubr.bf16.gmra.mrb[0].mxu0 %v2438
    %v2796 = vpop.f32.mrb[0].mxu0
    %v2797 = vadd.f32 0.0, %v2796
    %v2798 = vpop.f32.mrb[0].mxu0
    %v2799 = vpop.f32.mrb[0].mxu0
    %v2800 = vadd.f32 0.0, %v2799
    %v2801 = vpop.f32.mrb[0].mxu0
    %2802 = vdwg.mxu0
    %2803 = vmatprep.subr.bf16.mxu0 0
    %2804 = vmatpush1.bf16.msra.mxu0 %v2714
    %2805 = vmatprep.subr.bf16.mxu0 0
    %2806 = vmatpush1.bf16.msra.mxu0 %v2715
    %2807 = vmatprep.subr.bf16.mxu0 0
    %2808 = vmatpush1.bf16.msra.mxu0 %v2716
    %2809 = vmatprep.subr.bf16.mxu0 0
    %2810 = vmatpush1.bf16.msra.mxu0 %v2717
    %2811 = vmatprep.subr.bf16.mxu0 0
    %2812 = vmatpush1.bf16.msra.mxu0 %v2718
    %2813 = vmatprep.subr.bf16.mxu0 0
    %2814 = vmatpush1.bf16.msra.mxu0 %v2719
    %2815 = vmatprep.subr.bf16.mxu0 0
    %2816 = vmatpush1.bf16.msra.mxu0 %v2720
    %2817 = vmatprep.subr.bf16.mxu0 0
    %2818 = vmatpush1.bf16.msra.mxu0 %v2721
    %2819 = vmatprep.subr.bf16.mxu0 0
    %2820 = vmatpush1.bf16.msra.mxu0 %v2722
    %2821 = vmatprep.subr.bf16.mxu0 0
    %2822 = vmatpush1.bf16.msra.mxu0 %v2723
    %2823 = vmatprep.subr.bf16.mxu0 0
    %2824 = vmatpush1.bf16.msra.mxu0 %v2724
    %2825 = vmatprep.subr.bf16.mxu0 0
    %2826 = vmatpush1.bf16.msra.mxu0 %v2725
    %2827 = vmatprep.subr.bf16.mxu0 0
    %2828 = vmatpush1.bf16.msra.mxu0 %v2726
    %2829 = vmatprep.subr.bf16.mxu0 0
    %2830 = vmatpush1.bf16.msra.mxu0 %v2727
    %2831 = vmatprep.subr.bf16.mxu0 0
    %2832 = vmatpush1.bf16.msra.mxu0 %v2728
    %2833 = vmatprep.subr.bf16.mxu0 0
    %2834 = vmatpush1.bf16.msra.mxu0 %v2729
    %2835 = vmatprep.mubr.bf16.mxu0 %v2441
    %2836 = vmatmul.mubr.bf16.gmra.mrb[0].mxu0 %v2440
    %v2837 = vpop.f32.mrb[0].mxu0
    %v2838 = vadd.f32 %v2797, %v2837
    %v2839 = vpop.f32.mrb[0].mxu0
    %v2840 = vpop.f32.mrb[0].mxu0
    %v2841 = vadd.f32 %v2800, %v2840
    %v2842 = vpop.f32.mrb[0].mxu0
    %2843 = vdwg.mxu0
    %v2908 = vunpack.c.l.b16 %v2442
    %v2909 = vunpack.c.l.b16 %v2443
    %v2910 = vunpack.c.l.b16 %v2444
    %v2911 = vunpack.c.l.b16 %v2445
    %v2912 = vunpack.c.l.b16 %v2446
    %v2913 = vunpack.c.l.b16 %v2447
    %v2914 = vunpack.c.l.b16 %v2448
    %v2915 = vunpack.c.l.b16 %v2449
    %v2916 = vunpack.c.l.b16 %v2450
    %v2917 = vunpack.c.l.b16 %v2451
    %v2918 = vunpack.c.l.b16 %v2452
    %v2919 = vunpack.c.l.b16 %v2453
    %v2920 = vunpack.c.l.b16 %v2454
    %v2921 = vunpack.c.l.b16 %v2455
    %v2922 = vunpack.c.l.b16 %v2456
    %v2923 = vunpack.c.l.b16 %v2457
    %v2924 = vunpack.c.l.b16 %v2458
    %v2925 = vunpack.c.l.b16 %v2459
    %v2926 = vunpack.c.l.b16 %v2460
    %v2927 = vunpack.c.l.b16 %v2461
    %v2928 = vunpack.c.l.b16 %v2462
    %v2929 = vunpack.c.l.b16 %v2463
    %v2930 = vunpack.c.l.b16 %v2464
    %v2931 = vunpack.c.l.b16 %v2465
    %v2932 = vunpack.c.l.b16 %v2466
    %v2933 = vunpack.c.l.b16 %v2467
    %v2934 = vunpack.c.l.b16 %v2468
    %v2935 = vunpack.c.l.b16 %v2469
    %v2936 = vunpack.c.l.b16 %v2470
    %v2937 = vunpack.c.l.b16 %v2471
    %v2938 = vunpack.c.l.b16 %v2472
    %v2939 = vunpack.c.l.b16 %v2473
    %v2940 = vunpack.c.l.b16 %v2474
    %v2941 = vunpack.c.l.b16 %v2475
    %v2942 = vunpack.c.l.b16 %v2476
    %v2943 = vunpack.c.l.b16 %v2477
    %v2944 = vunpack.c.l.b16 %v2478
    %v2945 = vunpack.c.l.b16 %v2479
    %v2946 = vunpack.c.l.b16 %v2480
    %v2947 = vunpack.c.l.b16 %v2481
    %v2948 = vunpack.c.l.b16 %v2482
    %v2949 = vunpack.c.l.b16 %v2483
    %v2950 = vunpack.c.l.b16 %v2484
    %v2951 = vunpack.c.l.b16 %v2485
    %v2952 = vunpack.c.l.b16 %v2486
    %v2953 = vunpack.c.l.b16 %v2487
    %v2954 = vunpack.c.l.b16 %v2488
    %v2955 = vunpack.c.l.b16 %v2489
    %v2956 = vunpack.c.l.b16 %v2490
    %v2957 = vunpack.c.l.b16 %v2491
    %v2958 = vunpack.c.l.b16 %v2492
    %v2959 = vunpack.c.l.b16 %v2493
    %v2960 = vunpack.c.l.b16 %v2494
    %v2961 = vunpack.c.l.b16 %v2495
    %v2962 = vunpack.c.l.b16 %v2496
    %v2963 = vunpack.c.l.b16 %v2497
    %v2964 = vunpack.c.l.b16 %v2498
    %v2965 = vunpack.c.l.b16 %v2499
    %v2966 = vunpack.c.l.b16 %v2500
    %v2967 = vunpack.c.l.b16 %v2501
    %v2968 = vunpack.c.l.b16 %v2502
    %v2969 = vunpack.c.l.b16 %v2503
    %v2970 = vunpack.c.l.b16 %v2504
    %v2971 = vunpack.c.l.b16 %v2505
    %v2972 = vpack.c.b16 %v2909, %v2908
    %v2973 = vpack.c.b16 %v2911, %v2910
    %v2974 = vpack.c.b16 %v2913, %v2912
    %v2975 = vpack.c.b16 %v2915, %v2914
    %v2976 = vpack.c.b16 %v2917, %v2916
    %v2977 = vpack.c.b16 %v2919, %v2918
    %v2978 = vpack.c.b16 %v2921, %v2920
    %v2979 = vpack.c.b16 %v2923, %v2922
    %v2980 = vpack.c.b16 %v2925, %v2924
    %v2981 = vpack.c.b16 %v2927, %v2926
    %v2982 = vpack.c.b16 %v2929, %v2928
    %v2983 = vpack.c.b16 %v2931, %v2930
    %v2984 = vpack.c.b16 %v2933, %v2932
    %v2985 = vpack.c.b16 %v2935, %v2934
    %v2986 = vpack.c.b16 %v2937, %v2936
    %v2987 = vpack.c.b16 %v2939, %v2938
    %v2988 = vpack.c.b16 %v2941, %v2940
    %v2989 = vpack.c.b16 %v2943, %v2942
    %v2990 = vpack.c.b16 %v2945, %v2944
    %v2991 = vpack.c.b16 %v2947, %v2946
    %v2992 = vpack.c.b16 %v2949, %v2948
    %v2993 = vpack.c.b16 %v2951, %v2950
    %v2994 = vpack.c.b16 %v2953, %v2952
    %v2995 = vpack.c.b16 %v2955, %v2954
    %v2996 = vpack.c.b16 %v2957, %v2956
    %v2997 = vpack.c.b16 %v2959, %v2958
    %v2998 = vpack.c.b16 %v2961, %v2960
    %v2999 = vpack.c.b16 %v2963, %v2962
    %v3000 = vpack.c.b16 %v2965, %v2964
    %v3001 = vpack.c.b16 %v2967, %v2966
    %v3002 = vpack.c.b16 %v2969, %v2968
    %v3003 = vpack.c.b16 %v2971, %v2970
    %3036 = vmatprep.subr.bf16.mxu0 0
    %3037 = vmatpush1.bf16.msra.mxu0 %v2972
    %3038 = vmatprep.subr.bf16.mxu0 0
    %3039 = vmatpush1.bf16.msra.mxu0 %v2973
    %3040 = vmatprep.subr.bf16.mxu0 0
    %3041 = vmatpush1.bf16.msra.mxu0 %v2974
    %3042 = vmatprep.subr.bf16.mxu0 0
    %3043 = vmatpush1.bf16.msra.mxu0 %v2975
    %3044 = vmatprep.subr.bf16.mxu0 0
    %3045 = vmatpush1.bf16.msra.mxu0 %v2976
    %3046 = vmatprep.subr.bf16.mxu0 0
    %3047 = vmatpush1.bf16.msra.mxu0 %v2977
    %3048 = vmatprep.subr.bf16.mxu0 0
    %3049 = vmatpush1.bf16.msra.mxu0 %v2978
    %3050 = vmatprep.subr.bf16.mxu0 0
    %3051 = vmatpush1.bf16.msra.mxu0 %v2979
    %3052 = vmatprep.subr.bf16.mxu0 0
    %3053 = vmatpush1.bf16.msra.mxu0 %v2980
    %3054 = vmatprep.subr.bf16.mxu0 0
    %3055 = vmatpush1.bf16.msra.mxu0 %v2981
    %3056 = vmatprep.subr.bf16.mxu0 0
    %3057 = vmatpush1.bf16.msra.mxu0 %v2982
    %3058 = vmatprep.subr.bf16.mxu0 0
    %3059 = vmatpush1.bf16.msra.mxu0 %v2983
    %3060 = vmatprep.subr.bf16.mxu0 0
    %3061 = vmatpush1.bf16.msra.mxu0 %v2984
    %3062 = vmatprep.subr.bf16.mxu0 0
    %3063 = vmatpush1.bf16.msra.mxu0 %v2985
    %3064 = vmatprep.subr.bf16.mxu0 0
    %3065 = vmatpush1.bf16.msra.mxu0 %v2986
    %3066 = vmatprep.subr.bf16.mxu0 0
    %3067 = vmatpush1.bf16.msra.mxu0 %v2987
    %3068 = vmatprep.mubr.bf16.mxu0 %v1469
    %3069 = vmatmul.mubr.bf16.gmra.mrb[0].mxu0 %v1468
    %v3070 = vpop.f32.mrb[0].mxu0
    %v3071 = vadd.f32 %v2838, %v3070
    %v3072 = vpop.f32.mrb[0].mxu0
    %v3073 = vpop.f32.mrb[0].mxu0
    %v3074 = vadd.f32 %v2841, %v3073
    %v3075 = vpop.f32.mrb[0].mxu0
    %3076 = vdwg.mxu0
    %3077 = vmatprep.subr.bf16.mxu0 0
    %3078 = vmatpush1.bf16.msra.mxu0 %v2988
    %3079 = vmatprep.subr.bf16.mxu0 0
    %3080 = vmatpush1.bf16.msra.mxu0 %v2989
    %3081 = vmatprep.subr.bf16.mxu0 0
    %3082 = vmatpush1.bf16.msra.mxu0 %v2990
    %3083 = vmatprep.subr.bf16.mxu0 0
    %3084 = vmatpush1.bf16.msra.mxu0 %v2991
    %3085 = vmatprep.subr.bf16.mxu0 0
    %3086 = vmatpush1.bf16.msra.mxu0 %v2992
    %3087 = vmatprep.subr.bf16.mxu0 0
    %3088 = vmatpush1.bf16.msra.mxu0 %v2993
    %3089 = vmatprep.subr.bf16.mxu0 0
    %3090 = vmatpush1.bf16.msra.mxu0 %v2994
    %3091 = vmatprep.subr.bf16.mxu0 0
    %3092 = vmatpush1.bf16.msra.mxu0 %v2995
    %3093 = vmatprep.subr.bf16.mxu0 0
    %3094 = vmatpush1.bf16.msra.mxu0 %v2996
    %3095 = vmatprep.subr.bf16.mxu0 0
    %3096 = vmatpush1.bf16.msra.mxu0 %v2997
    %3097 = vmatprep.subr.bf16.mxu0 0
    %3098 = vmatpush1.bf16.msra.mxu0 %v2998
    %3099 = vmatprep.subr.bf16.mxu0 0
    %3100 = vmatpush1.bf16.msra.mxu0 %v2999
    %3101 = vmatprep.subr.bf16.mxu0 0
    %3102 = vmatpush1.bf16.msra.mxu0 %v3000
    %3103 = vmatprep.subr.bf16.mxu0 0
    %3104 = vmatpush1.bf16.msra.mxu0 %v3001
    %3105 = vmatprep.subr.bf16.mxu0 0
    %3106 = vmatpush1.bf16.msra.mxu0 %v3002
    %3107 = vmatprep.subr.bf16.mxu0 0
    %3108 = vmatpush1.bf16.msra.mxu0 %v3003
    %3109 = vmatprep.mubr.bf16.mxu0 %v1471
    %3110 = vmatmul.mubr.bf16.gmra.mrb[0].mxu0 %v1470
    %v3111 = vpop.f32.mrb[0].mxu0
    %v3112 = vadd.f32 %v3071, %v3111
    %v3113 = vpop.f32.mrb[0].mxu0
    %v3114 = vpop.f32.mrb[0].mxu0
    %v3115 = vadd.f32 %v3074, %v3114
    %v3116 = vpop.f32.mrb[0].mxu0
    %3117 = vdwg.mxu0
    %v3118 = vld [vmem:[#allocation17] sm:$0x1]
    %v3120 = vlaneseq
    %v3121 = vshrl.u32 %v3120, 7
    %v3122 = vsub.s32 0, %v3121
    %v3123 = vrot.slane %v3118, %v3122
    %v3125 = vadd.f32 %v3112, %v3123
    %v3126 = vadd.f32 %v3115, %v3123
    %3127 = vst [vmem:[#allocation19] sm:$0xff] %v3125
    %3128 = vst [vmem:[#allocation19 + $0x8] sm:$0xff] %v3126
    // Predicated region
    $region82: #{tpu_custom_call.1} parent=1 // pred_check
      _
    $region83: #{tpu_custom_call.1} parent=1 // pred_check_branch
      %3130 = sbr.rel (0) target = $region85
    $region84: #{tpu_custom_call.1} parent=1 // pred_region
      %s3132 = ssub.s32 256, 256
      %3133 = vsyncadd [#allocation4], %s3132
      %s3134 = sshll.u32 [#allocation19], 4
      %s3135 = int_to_ptr.vmem [resolvable:$true] %s3134
      %3140 = dma.vmem_to_hbm [thread:$0]  %s3135, 256, %s10, [#allocation4], 128, 128, 8
    $region85: #{tpu_custom_call.1} parent=1 // pred_fallthru
      _
    // Predicated region
    $region86: #{tpu_custom_call.1} parent=1 // pred_check
      _
    $region87: #{tpu_custom_call.1} parent=1 // pred_check_branch
      %3142 = sbr.rel (0) target = $region89
    $region88: #{tpu_custom_call.1} parent=1 // pred_region
      %3143 = dma.done [#allocation4], 256
    $region89: #{tpu_custom_call.1} parent=1 // pred_fallthru
      _
    %3144 = vsyncpa [#allocation3], 1
    %3145 = vsyncpa [#allocation6], 1
    %3146 = vsyncpa [#allocation9], 1
    %3147 = vsyncpa [#allocation12], 1
    %3148 = vsyncpa [#allocation15], 1
    %3149 = vsyncpa [#allocation18], 1
    %3150 = vsyncpa [#allocation4], 1

</llo_original>
